<compile_context>
chip_gen: v7x
topology: tpu7x:2x2x1
jax: 0.10.0
libtpu: 0.0.40
codegen_flags: <defaults>
</compile_context>

<pallas_src>
import functools

import jax
import jax.numpy as jnp
from jax.experimental import pallas as pl
from jax.experimental.pallas import tpu as pltpu


def _cross_attn_kernel(x_ref, ctx_ref, wq_ref, wk_ref, wv_ref, wo_ref,
                       o_ref, acc_ref, *, scale, head_dim, heads_per_block,
                       use_approx_recip):
    # x_ref:   (Bt, N, C)   query rows for Bt batch elements
    # ctx_ref: (Bt, M, C)   context rows for the same batch elements
    # wq/wk/wv_ref: (Hn, C, Db)  packed weights, fully VMEM-resident
    # wo_ref:  (Hn, Db, C)       (constant index_map -> DMA'd once)
    # o_ref:   (Bt, N, C)   output block (resident across the head-block axis)
    # acc_ref: (Bt, N, C)   f32 output-projection accumulator
    hb = pl.program_id(1)
    d = head_dim
    Hb = heads_per_block
    Db = Hb * d

    @pl.when(hb == 0)
    def _():
        acc_ref[...] = jnp.zeros_like(acc_ref)

    Bt, N, C = x_ref.shape
    _, M, _ = ctx_ref.shape

    cdt = x_ref.dtype  # MXU operand dtype follows the input/compute dtype

    x = x_ref[...].reshape(Bt * N, C)
    ctx = ctx_ref[...].reshape(Bt * M, C)
    wq = wq_ref[hb]     # (C, Db)  dynamic leading-axis index, no lane slicing
    wk = wk_ref[hb]
    wv = wv_ref[hb]
    wo = wo_ref[hb]     # (Db, C)

    # Wide (Db-lane) projections, full-C contraction, batch rows flattened so
    # the MXU row dim is Bt*N / Bt*M.  Scale is folded into q.  k/v stay in the
    # compute dtype (no f32 round-trip) -- S and PV still accumulate in f32.
    q = (jnp.dot(x, wq, preferred_element_type=jnp.float32) * scale).astype(cdt)
    k = jnp.dot(ctx, wk, preferred_element_type=cdt)
    v = jnp.dot(ctx, wv, preferred_element_type=cdt)
    q = q.reshape(Bt, N, Db)
    k = k.reshape(Bt, M, Db)
    v = v.reshape(Bt, M, Db)

    # Per-head attention (softmax must not mix heads or batches); unrolled over
    # the Hb heads of this block.  NT dot_general -> no in-kernel k transpose.
    outs = []
    for hh in range(Hb):
        lo = hh * d
        q_h = q[:, :, lo:lo + d]     # (Bt, N, d)
        k_h = k[:, :, lo:lo + d]     # (Bt, M, d)
        v_h = v[:, :, lo:lo + d]     # (Bt, M, d)
        s = jax.lax.dot_general(
            q_h, k_h,
            dimension_numbers=(((2,), (2,)), ((0,), (0,))),
            preferred_element_type=jnp.float32)              # (Bt, N, M) f32
        s = s - jnp.max(s, axis=-1, keepdims=True)
        p = jnp.exp(s)
        denom = jnp.sum(p, axis=-1, keepdims=True)
        if use_approx_recip:
            p = p * pl.reciprocal(denom, approx=True)        # EUP slot (bf16 path)
        else:
            p = p / denom                                    # exact f32 parity
        oh = jax.lax.dot_general(
            p.astype(cdt), v_h,
            dimension_numbers=(((2,), (1,)), ((0,), (0,))),
            preferred_element_type=jnp.float32)              # (Bt, N, d) f32
        outs.append(oh.astype(cdt))

    # Head "concat" inside the block, then ONE wide output-projection matmul
    # (K = Db contraction) accumulated into the resident f32 accumulator.
    oh_wide = outs[0] if Hb == 1 else jnp.concatenate(outs, axis=-1)
    oh_wide = oh_wide.reshape(Bt * N, Db)
    acc_ref[...] += jnp.dot(
        oh_wide, wo, preferred_element_type=jnp.float32).reshape(Bt, N, C)

    @pl.when(hb == pl.num_programs(1) - 1)
    def _():
        o_ref[...] = acc_ref[...].astype(o_ref.dtype)
    # TODO(synk): optional boolean `mask` (b n m) path of the module is not
    # wired in; the default mask=None forward is implemented.


def _largest_divisor_leq(n, cap):
    cap = int(max(1, min(n, cap)))
    for c in range(cap, 0, -1):
        if n % c == 0:
            return c
    return 1


def cross_attention(x, context, wq_t, wkv_t, wo_t, *, num_heads, head_dim,
                    compute_dtype=None):
    """Pallas cross-attention.  x: (B,N,C), context: (B,M,C); weights (in,out)."""
    B, N, C = x.shape
    _, M, _ = context.shape
    H, d = num_heads, head_dim
    assert C == H * d
    out_dtype = x.dtype
    scale = float(d) ** (-0.5)

    # Optional bf16-compute fast path for f32 inputs (biggest win on v5e's
    # bf16-native MXU); accumulation / softmax stay f32, output stays f32.
    if compute_dtype is not None and jnp.dtype(compute_dtype) != jnp.dtype(x.dtype):
        x = x.astype(compute_dtype)
        context = context.astype(compute_dtype)
        wq_t = wq_t.astype(compute_dtype)
        wkv_t = wkv_t.astype(compute_dtype)
        wo_t = wo_t.astype(compute_dtype)

    # Head-block size: Hb heads per grid step so projection lane width and the
    # output-projection contraction depth are Hb*d (target 256 = v6e/v7x MXU
    # width; also fills v5e's 128).  Batch-block size: Bt batch rows per step
    # so small-N matmuls get more MXU rows and per-step overhead is amortized.
    Hb = _largest_divisor_leq(H, max(1, 256 // d))
    Hn = H // Hb
    Db = Hb * d
    isz = jnp.dtype(x.dtype).itemsize
    if N % 8 == 0 and M % 8 == 0:
        bt_cap = min(max(1, 256 // max(N, 1)),
                     max(1, (8 << 20) // max(1, M * C * isz)))
    else:
        bt_cap = 1  # keep row-flattening sublane-tile aligned
    Bt = _largest_divisor_leq(B, bt_cap)

    # Split the fused KV weight and pack all weights head-BLOCK-major outside
    # the kernel (cheap XLA reshapes on small 2-D weights).
    wk_t = wkv_t[:, :C]
    wv_t = wkv_t[:, C:]
    wq_p = wq_t.reshape(C, Hn, Db).transpose(1, 0, 2)   # (Hn, C, Db)
    wk_p = wk_t.reshape(C, Hn, Db).transpose(1, 0, 2)   # (Hn, C, Db)
    wv_p = wv_t.reshape(C, Hn, Db).transpose(1, 0, 2)   # (Hn, C, Db)
    wo_p = wo_t.reshape(Hn, Db, C)                      # (Hn, Db, C)

    # Generation-aware VMEM budget: streamed io tiles (double-buffered),
    # resident weights, f32 accumulator and intermediates; clamped to 80% of
    # the physical per-core VMEM (64 MiB on v7x, 128 MiB on v5e/v6e).
    io_bytes = 2 * isz * Bt * (2 * N * C + M * C)
    w_bytes = 2 * isz * 4 * C * C
    acc_bytes = 4 * Bt * N * C
    work_bytes = 4 * Bt * (2 * N * Db + 2 * M * Db + 2 * N * M + N * C)
    want = 2 * (io_bytes + w_bytes + acc_bytes + work_bytes) + (8 << 20)
    try:
        info = pltpu.get_tpu_info()
        vmem_cap = int(getattr(info, "vmem_capacity_bytes", 64 << 20))
    except Exception:
        vmem_cap = 64 << 20   # assume the smallest current-gen VMEM (v7x)
    vmem_limit = int(max(32 << 20, min(want, int(0.8 * vmem_cap))))

    kernel = functools.partial(
        _cross_attn_kernel,
        scale=scale,
        head_dim=d,
        heads_per_block=Hb,
        use_approx_recip=(jnp.dtype(x.dtype) == jnp.dtype(jnp.bfloat16)),
    )

    return pl.pallas_call(
        kernel,
        out_shape=jax.ShapeDtypeStruct((B, N, C), out_dtype),
        grid_spec=pltpu.PrefetchScalarGridSpec(
            num_scalar_prefetch=0,
            grid=(B // Bt, Hn),                    # head-block axis innermost
            in_specs=[
                pl.BlockSpec((Bt, N, C), lambda b, h: (b, 0, 0)),    # x
                pl.BlockSpec((Bt, M, C), lambda b, h: (b, 0, 0)),    # context
                pl.BlockSpec((Hn, C, Db), lambda b, h: (0, 0, 0)),   # Wq (resident)
                pl.BlockSpec((Hn, C, Db), lambda b, h: (0, 0, 0)),   # Wk (resident)
                pl.BlockSpec((Hn, C, Db), lambda b, h: (0, 0, 0)),   # Wv (resident)
                pl.BlockSpec((Hn, Db, C), lambda b, h: (0, 0, 0)),   # Wo (resident)
            ],
            out_specs=pl.BlockSpec((Bt, N, C), lambda b, h: (b, 0, 0)),
            scratch_shapes=[pltpu.VMEM((Bt, N, C), jnp.float32)],
        ),
        compiler_params=pltpu.CompilerParams(
            dimension_semantics=("parallel", "arbitrary"),
            vmem_limit_bytes=vmem_limit,
        ),
    )(x, context, wq_p, wk_p, wv_p, wo_p)


def cross_attention_ref(x, context, wq_t, wkv_t, wo_t, *, num_heads, head_dim):
    """Pure-JAX reference mirroring the PyTorch forward (mask=None)."""
    B, N, C = x.shape
    _, M, _ = context.shape
    scale = head_dim ** (-0.5)
    q = x @ wq_t                                   # (B, N, C)
    kv = context @ wkv_t                           # (B, M, 2C)
    k, v = kv[..., :C], kv[..., C:]
    q = q.reshape(B, N, num_heads, head_dim).transpose(0, 2, 1, 3)
    k = k.reshape(B, M, num_heads, head_dim).transpose(0, 2, 1, 3)
    v = v.reshape(B, M, num_heads, head_dim).transpose(0, 2, 1, 3)
    attn = jnp.einsum("bhnd,bhmd->bhnm", q, k) * scale
    attn = jax.nn.softmax(attn, axis=-1)
    out = jnp.einsum("bhnm,bhmd->bhnd", attn, v)
    out = out.transpose(0, 2, 1, 3).reshape(B, N, C)
    return out @ wo_t


if __name__ == "__main__":
    # Small, module-consistent shapes (head_dim matches the module default 64;
    # C >= 128 so output stores are lane-dense).
    B, N, M = 2, 8, 32
    dim, head_dim = 256, 64
    num_heads = dim // head_dim   # = 4

    key = jax.random.PRNGKey(0)
    kx, kc, kq, kkv, ko = jax.random.split(key, 5)

    x = jax.random.normal(kx, (B, N, dim), dtype=jnp.float32)
    context = jax.random.normal(kc, (B, M, dim), dtype=jnp.float32)

    # Deterministic params (qkv_bias=False, proj_bias=False => no biases).
    # PyTorch nn.Linear stores weight as (out, in); we pass (in, out) transposes.
    wq = jax.random.normal(kq, (dim, dim), dtype=jnp.float32) * 0.02        # (out, in)
    wkv = jax.random.normal(kkv, (2 * dim, dim), dtype=jnp.float32) * 0.02  # (out, in)
    wo = jax.random.normal(ko, (dim, dim), dtype=jnp.float32) * 0.02        # (out, in)
    wq_t, wkv_t, wo_t = wq.T, wkv.T, wo.T

    ref = cross_attention_ref(x, context, wq_t, wkv_t, wo_t,
                              num_heads=num_heads, head_dim=head_dim)

    # f32 path: exact-semantics check against the pure-JAX reference.
    out = cross_attention(x, context, wq_t, wkv_t, wo_t,
                          num_heads=num_heads, head_dim=head_dim)
    out = jax.block_until_ready(out)
    assert out.shape == (B, N, dim)
    err = float(jnp.max(jnp.abs(out - ref)))
    assert jnp.allclose(out, ref, atol=1e-3, rtol=1e-3), f"f32 mismatch, max err {err}"

    # bf16-compute fast path: f32 in/out, bf16 MXU operands, f32 accumulation
    # (exercises the v5e-oriented compute_dtype flag and the bf16 kernel math).
    out_bf = cross_attention(x, context, wq_t, wkv_t, wo_t,
                             num_heads=num_heads, head_dim=head_dim,
                             compute_dtype=jnp.bfloat16)
    out_bf = jax.block_until_ready(out_bf)
    assert out_bf.shape == (B, N, dim)
    err_bf = float(jnp.max(jnp.abs(out_bf - ref)))
    assert err_bf < 5e-2, f"bf16 mismatch, max err {err_bf}"

    print("KERNEL_OK")
</pallas_src>

<mosaic_0001>
module attributes {stable_mosaic.version = 11 : i64} {
  func.func @_cross_attn_kernel(%arg0: i32, %arg1: i32, %arg2: memref<2x8x256xf32, #tpu.memory_space<vmem>>, %arg3: memref<2x32x256xf32, #tpu.memory_space<vmem>>, %arg4: memref<1x256x256xf32, #tpu.memory_space<vmem>>, %arg5: memref<1x256x256xf32, #tpu.memory_space<vmem>>, %arg6: memref<1x256x256xf32, #tpu.memory_space<vmem>>, %arg7: memref<1x256x256xf32, #tpu.memory_space<vmem>>, %arg8: memref<2x8x256xf32, #tpu.memory_space<vmem>>, %arg9: memref<2x8x256xf32, #tpu.memory_space<vmem>>) attributes {dimension_semantics = [#tpu.dimension_semantics<parallel>, #tpu.dimension_semantics<arbitrary>], iteration_bounds = array<i64: 1, 1>, scalar_prefetch = 0 : i64, scratch_operands = 1 : i64, tpu.core_type = #tpu.core_type<tc>, window_params = [{transform_indices = @transform_0, window_bounds = array<i64: 2, 8, 256>}, {transform_indices = @transform_1, window_bounds = array<i64: 2, 32, 256>}, {pipeline_mode = #tpu.pipeline_mode<synchronous>, transform_indices = @transform_2, window_bounds = array<i64: 1, 256, 256>}, {pipeline_mode = #tpu.pipeline_mode<synchronous>, transform_indices = @transform_3, window_bounds = array<i64: 1, 256, 256>}, {pipeline_mode = #tpu.pipeline_mode<synchronous>, transform_indices = @transform_4, window_bounds = array<i64: 1, 256, 256>}, {pipeline_mode = #tpu.pipeline_mode<synchronous>, transform_indices = @transform_5, window_bounds = array<i64: 1, 256, 256>}, {transform_indices = @transform_6, window_bounds = array<i64: 2, 8, 256>}]} {
    %c0_i32 = arith.constant 0 : i32
    %0 = arith.cmpi eq, %arg1, %c0_i32 : i32
    %1 = arith.extui %0 : i1 to i32
    %c0_i32_0 = arith.constant 0 : i32
    %2 = arith.cmpi ne, %1, %c0_i32_0 : i32
    scf.if %2 {
      %cst_42 = arith.constant 0.000000e+00 : f32
      %93 = vector.broadcast %cst_42 : f32 to vector<2x8x256xf32>
      %c0_43 = arith.constant 0 : index
      %c0_44 = arith.constant 0 : index
      %c0_45 = arith.constant 0 : index
      %94 = vector.load %arg9[%c0_43, %c0_44, %c0_45] : memref<2x8x256xf32, #tpu.memory_space<vmem>>, vector<2x8x256xf32>
      tpu.vector_store %arg9[%c0_43, %c0_44, %c0_45], %93 {strides = array<i32>} : memref<2x8x256xf32, #tpu.memory_space<vmem>>, vector<2x8x256xf32>,
    } else {
    }
    %c0 = arith.constant 0 : index
    %c0_1 = arith.constant 0 : index
    %c0_2 = arith.constant 0 : index
    %3 = vector.load %arg2[%c0, %c0_1, %c0_2] : memref<2x8x256xf32, #tpu.memory_space<vmem>>, vector<2x8x256xf32>
    %4 = vector.shape_cast %3 : vector<2x8x256xf32> to vector<16x256xf32>
    %c0_3 = arith.constant 0 : index
    %c0_4 = arith.constant 0 : index
    %c0_5 = arith.constant 0 : index
    %5 = vector.load %arg3[%c0_3, %c0_4, %c0_5] : memref<2x32x256xf32, #tpu.memory_space<vmem>>, vector<2x32x256xf32>
    %6 = vector.shape_cast %5 : vector<2x32x256xf32> to vector<64x256xf32>
    %7 = arith.index_cast %arg1 : i32 to index
    %c0_6 = arith.constant 0 : index
    %c0_7 = arith.constant 0 : index
    %8 = vector.load %arg4[%7, %c0_6, %c0_7] : memref<1x256x256xf32, #tpu.memory_space<vmem>>, vector<1x256x256xf32>
    %9 = vector.shape_cast %8 : vector<1x256x256xf32> to vector<256x256xf32>
    %10 = arith.index_cast %arg1 : i32 to index
    %c0_8 = arith.constant 0 : index
    %c0_9 = arith.constant 0 : index
    %11 = vector.load %arg5[%10, %c0_8, %c0_9] : memref<1x256x256xf32, #tpu.memory_space<vmem>>, vector<1x256x256xf32>
    %12 = vector.shape_cast %11 : vector<1x256x256xf32> to vector<256x256xf32>
    %13 = arith.index_cast %arg1 : i32 to index
    %c0_10 = arith.constant 0 : index
    %c0_11 = arith.constant 0 : index
    %14 = vector.load %arg6[%13, %c0_10, %c0_11] : memref<1x256x256xf32, #tpu.memory_space<vmem>>, vector<1x256x256xf32>
    %15 = vector.shape_cast %14 : vector<1x256x256xf32> to vector<256x256xf32>
    %16 = arith.index_cast %arg1 : i32 to index
    %c0_12 = arith.constant 0 : index
    %c0_13 = arith.constant 0 : index
    %17 = vector.load %arg7[%16, %c0_12, %c0_13] : memref<1x256x256xf32, #tpu.memory_space<vmem>>, vector<1x256x256xf32>
    %18 = vector.shape_cast %17 : vector<1x256x256xf32> to vector<256x256xf32>
    %cst = arith.constant dense<0.000000e+00> : vector<16x256xf32>
    %19 = tpu.matmul %4, %9, %cst {dimension_numbers = #tpu.dot_dimension_numbers<[1], [0], [0], [1], [0, 0, 1, 1], [], []>} : vector<16x256xf32>, vector<256x256xf32>, vector<16x256xf32> -> vector<16x256xf32>
    %cst_14 = arith.constant 1.250000e-01 : f32
    %20 = vector.broadcast %cst_14 : f32 to vector<16x256xf32>
    %21 = arith.mulf %19, %20 : vector<16x256xf32>
    %cst_15 = arith.constant dense<0.000000e+00> : vector<64x256xf32>
    %22 = tpu.matmul %6, %12, %cst_15 {dimension_numbers = #tpu.dot_dimension_numbers<[1], [0], [0], [1], [0, 0, 1, 1], [], []>} : vector<64x256xf32>, vector<256x256xf32>, vector<64x256xf32> -> vector<64x256xf32>
    %cst_16 = arith.constant dense<0.000000e+00> : vector<64x256xf32>
    %23 = tpu.matmul %6, %15, %cst_16 {dimension_numbers = #tpu.dot_dimension_numbers<[1], [0], [0], [1], [0, 0, 1, 1], [], []>} : vector<64x256xf32>, vector<256x256xf32>, vector<64x256xf32> -> vector<64x256xf32>
    %24 = vector.shape_cast %21 : vector<16x256xf32> to vector<2x8x256xf32>
    %25 = vector.shape_cast %22 : vector<64x256xf32> to vector<2x32x256xf32>
    %26 = vector.shape_cast %23 : vector<64x256xf32> to vector<2x32x256xf32>
    %27 = vector.extract_strided_slice %24 {offsets = [0, 0, 0], sizes = [2, 8, 64], strides = [1, 1, 1]} : vector<2x8x256xf32> to vector<2x8x64xf32>
    %28 = vector.extract_strided_slice %25 {offsets = [0, 0, 0], sizes = [2, 32, 64], strides = [1, 1, 1]} : vector<2x32x256xf32> to vector<2x32x64xf32>
    %29 = vector.extract_strided_slice %26 {offsets = [0, 0, 0], sizes = [2, 32, 64], strides = [1, 1, 1]} : vector<2x32x256xf32> to vector<2x32x64xf32>
    %cst_17 = arith.constant dense<0.000000e+00> : vector<2x8x32xf32>
    %30 = tpu.matmul %27, %28, %cst_17 {dimension_numbers = #tpu.dot_dimension_numbers<[2], [2], [1], [1], [0, 0, 0, 1, 1, 1], [0], [0]>} : vector<2x8x64xf32>, vector<2x32x64xf32>, vector<2x8x32xf32> -> vector<2x8x32xf32>
    %cst_18 = arith.constant dense<0xFF800000> : vector<2x8xf32>
    %31 = vector.multi_reduction <maximumf>, %30, %cst_18 [2] : vector<2x8x32xf32> to vector<2x8xf32>
    %32 = vector.shape_cast %31 : vector<2x8xf32> to vector<2x8x1xf32>
    %33 = vector.broadcast %32 : vector<2x8x1xf32> to vector<2x8x32xf32>
    %34 = arith.subf %30, %33 : vector<2x8x32xf32>
    %35 = math.exp %34 : vector<2x8x32xf32>
    %cst_19 = arith.constant dense<0.000000e+00> : vector<2x8xf32>
    %36 = vector.multi_reduction <add>, %35, %cst_19 [2] : vector<2x8x32xf32> to vector<2x8xf32>
    %37 = vector.shape_cast %36 : vector<2x8xf32> to vector<2x8x1xf32>
    %38 = vector.broadcast %37 : vector<2x8x1xf32> to vector<2x8x32xf32>
    %39 = arith.divf %35, %38 : vector<2x8x32xf32>
    %cst_20 = arith.constant dense<0.000000e+00> : vector<2x8x64xf32>
    %40 = tpu.matmul %39, %29, %cst_20 {dimension_numbers = #tpu.dot_dimension_numbers<[2], [1], [1], [2], [0, 0, 0, 1, 1, 2], [0], [0]>} : vector<2x8x32xf32>, vector<2x32x64xf32>, vector<2x8x64xf32> -> vector<2x8x64xf32>
    %41 = vector.extract_strided_slice %24 {offsets = [0, 0, 64], sizes = [2, 8, 64], strides = [1, 1, 1]} : vector<2x8x256xf32> to vector<2x8x64xf32>
    %42 = vector.extract_strided_slice %25 {offsets = [0, 0, 64], sizes = [2, 32, 64], strides = [1, 1, 1]} : vector<2x32x256xf32> to vector<2x32x64xf32>
    %43 = vector.extract_strided_slice %26 {offsets = [0, 0, 64], sizes = [2, 32, 64], strides = [1, 1, 1]} : vector<2x32x256xf32> to vector<2x32x64xf32>
    %cst_21 = arith.constant dense<0.000000e+00> : vector<2x8x32xf32>
    %44 = tpu.matmul %41, %42, %cst_21 {dimension_numbers = #tpu.dot_dimension_numbers<[2], [2], [1], [1], [0, 0, 0, 1, 1, 1], [0], [0]>} : vector<2x8x64xf32>, vector<2x32x64xf32>, vector<2x8x32xf32> -> vector<2x8x32xf32>
    %cst_22 = arith.constant dense<0xFF800000> : vector<2x8xf32>
    %45 = vector.multi_reduction <maximumf>, %44, %cst_22 [2] : vector<2x8x32xf32> to vector<2x8xf32>
    %46 = vector.shape_cast %45 : vector<2x8xf32> to vector<2x8x1xf32>
    %47 = vector.broadcast %46 : vector<2x8x1xf32> to vector<2x8x32xf32>
    %48 = arith.subf %44, %47 : vector<2x8x32xf32>
    %49 = math.exp %48 : vector<2x8x32xf32>
    %cst_23 = arith.constant dense<0.000000e+00> : vector<2x8xf32>
    %50 = vector.multi_reduction <add>, %49, %cst_23 [2] : vector<2x8x32xf32> to vector<2x8xf32>
    %51 = vector.shape_cast %50 : vector<2x8xf32> to vector<2x8x1xf32>
    %52 = vector.broadcast %51 : vector<2x8x1xf32> to vector<2x8x32xf32>
    %53 = arith.divf %49, %52 : vector<2x8x32xf32>
    %cst_24 = arith.constant dense<0.000000e+00> : vector<2x8x64xf32>
    %54 = tpu.matmul %53, %43, %cst_24 {dimension_numbers = #tpu.dot_dimension_numbers<[2], [1], [1], [2], [0, 0, 0, 1, 1, 2], [0], [0]>} : vector<2x8x32xf32>, vector<2x32x64xf32>, vector<2x8x64xf32> -> vector<2x8x64xf32>
    %55 = vector.extract_strided_slice %24 {offsets = [0, 0, 128], sizes = [2, 8, 64], strides = [1, 1, 1]} : vector<2x8x256xf32> to vector<2x8x64xf32>
    %56 = vector.extract_strided_slice %25 {offsets = [0, 0, 128], sizes = [2, 32, 64], strides = [1, 1, 1]} : vector<2x32x256xf32> to vector<2x32x64xf32>
    %57 = vector.extract_strided_slice %26 {offsets = [0, 0, 128], sizes = [2, 32, 64], strides = [1, 1, 1]} : vector<2x32x256xf32> to vector<2x32x64xf32>
    %cst_25 = arith.constant dense<0.000000e+00> : vector<2x8x32xf32>
    %58 = tpu.matmul %55, %56, %cst_25 {dimension_numbers = #tpu.dot_dimension_numbers<[2], [2], [1], [1], [0, 0, 0, 1, 1, 1], [0], [0]>} : vector<2x8x64xf32>, vector<2x32x64xf32>, vector<2x8x32xf32> -> vector<2x8x32xf32>
    %cst_26 = arith.constant dense<0xFF800000> : vector<2x8xf32>
    %59 = vector.multi_reduction <maximumf>, %58, %cst_26 [2] : vector<2x8x32xf32> to vector<2x8xf32>
    %60 = vector.shape_cast %59 : vector<2x8xf32> to vector<2x8x1xf32>
    %61 = vector.broadcast %60 : vector<2x8x1xf32> to vector<2x8x32xf32>
    %62 = arith.subf %58, %61 : vector<2x8x32xf32>
    %63 = math.exp %62 : vector<2x8x32xf32>
    %cst_27 = arith.constant dense<0.000000e+00> : vector<2x8xf32>
    %64 = vector.multi_reduction <add>, %63, %cst_27 [2] : vector<2x8x32xf32> to vector<2x8xf32>
    %65 = vector.shape_cast %64 : vector<2x8xf32> to vector<2x8x1xf32>
    %66 = vector.broadcast %65 : vector<2x8x1xf32> to vector<2x8x32xf32>
    %67 = arith.divf %63, %66 : vector<2x8x32xf32>
    %cst_28 = arith.constant dense<0.000000e+00> : vector<2x8x64xf32>
    %68 = tpu.matmul %67, %57, %cst_28 {dimension_numbers = #tpu.dot_dimension_numbers<[2], [1], [1], [2], [0, 0, 0, 1, 1, 2], [0], [0]>} : vector<2x8x32xf32>, vector<2x32x64xf32>, vector<2x8x64xf32> -> vector<2x8x64xf32>
    %69 = vector.extract_strided_slice %24 {offsets = [0, 0, 192], sizes = [2, 8, 64], strides = [1, 1, 1]} : vector<2x8x256xf32> to vector<2x8x64xf32>
    %70 = vector.extract_strided_slice %25 {offsets = [0, 0, 192], sizes = [2, 32, 64], strides = [1, 1, 1]} : vector<2x32x256xf32> to vector<2x32x64xf32>
    %71 = vector.extract_strided_slice %26 {offsets = [0, 0, 192], sizes = [2, 32, 64], strides = [1, 1, 1]} : vector<2x32x256xf32> to vector<2x32x64xf32>
    %cst_29 = arith.constant dense<0.000000e+00> : vector<2x8x32xf32>
    %72 = tpu.matmul %69, %70, %cst_29 {dimension_numbers = #tpu.dot_dimension_numbers<[2], [2], [1], [1], [0, 0, 0, 1, 1, 1], [0], [0]>} : vector<2x8x64xf32>, vector<2x32x64xf32>, vector<2x8x32xf32> -> vector<2x8x32xf32>
    %cst_30 = arith.constant dense<0xFF800000> : vector<2x8xf32>
    %73 = vector.multi_reduction <maximumf>, %72, %cst_30 [2] : vector<2x8x32xf32> to vector<2x8xf32>
    %74 = vector.shape_cast %73 : vector<2x8xf32> to vector<2x8x1xf32>
    %75 = vector.broadcast %74 : vector<2x8x1xf32> to vector<2x8x32xf32>
    %76 = arith.subf %72, %75 : vector<2x8x32xf32>
    %77 = math.exp %76 : vector<2x8x32xf32>
    %cst_31 = arith.constant dense<0.000000e+00> : vector<2x8xf32>
    %78 = vector.multi_reduction <add>, %77, %cst_31 [2] : vector<2x8x32xf32> to vector<2x8xf32>
    %79 = vector.shape_cast %78 : vector<2x8xf32> to vector<2x8x1xf32>
    %80 = vector.broadcast %79 : vector<2x8x1xf32> to vector<2x8x32xf32>
    %81 = arith.divf %77, %80 : vector<2x8x32xf32>
    %cst_32 = arith.constant dense<0.000000e+00> : vector<2x8x64xf32>
    %82 = tpu.matmul %81, %71, %cst_32 {dimension_numbers = #tpu.dot_dimension_numbers<[2], [1], [1], [2], [0, 0, 0, 1, 1, 2], [0], [0]>} : vector<2x8x32xf32>, vector<2x32x64xf32>, vector<2x8x64xf32> -> vector<2x8x64xf32>
    %83 = tpu.concatenate %40, %54, %68, %82 in 2 : vector<2x8x64xf32>, vector<2x8x64xf32>, vector<2x8x64xf32>, vector<2x8x64xf32> -> vector<2x8x256xf32>
    %84 = vector.shape_cast %83 : vector<2x8x256xf32> to vector<16x256xf32>
    %c0_33 = arith.constant 0 : index
    %c0_34 = arith.constant 0 : index
    %c0_35 = arith.constant 0 : index
    %85 = vector.load %arg9[%c0_33, %c0_34, %c0_35] : memref<2x8x256xf32, #tpu.memory_space<vmem>>, vector<2x8x256xf32>
    %cst_36 = arith.constant dense<0.000000e+00> : vector<16x256xf32>
    %86 = tpu.matmul %84, %18, %cst_36 {dimension_numbers = #tpu.dot_dimension_numbers<[1], [0], [0], [1], [0, 0, 1, 1], [], []>} : vector<16x256xf32>, vector<256x256xf32>, vector<16x256xf32> -> vector<16x256xf32>
    %87 = vector.shape_cast %86 : vector<16x256xf32> to vector<2x8x256xf32>
    %88 = arith.addf %85, %87 : vector<2x8x256xf32>
    %c0_37 = arith.constant 0 : index
    %c0_38 = arith.constant 0 : index
    %c0_39 = arith.constant 0 : index
    %89 = vector.load %arg9[%c0_37, %c0_38, %c0_39] : memref<2x8x256xf32, #tpu.memory_space<vmem>>, vector<2x8x256xf32>
    tpu.vector_store %arg9[%c0_37, %c0_38, %c0_39], %88 {strides = array<i32>} : memref<2x8x256xf32, #tpu.memory_space<vmem>>, vector<2x8x256xf32>,
    %c0_i32_40 = arith.constant 0 : i32
    %90 = arith.cmpi eq, %arg1, %c0_i32_40 : i32
    %91 = arith.extui %90 : i1 to i32
    %c0_i32_41 = arith.constant 0 : i32
    %92 = arith.cmpi ne, %91, %c0_i32_41 : i32
    scf.if %92 {
      %c0_42 = arith.constant 0 : index
      %c0_43 = arith.constant 0 : index
      %c0_44 = arith.constant 0 : index
      %93 = vector.load %arg9[%c0_42, %c0_43, %c0_44] : memref<2x8x256xf32, #tpu.memory_space<vmem>>, vector<2x8x256xf32>
      %c0_45 = arith.constant 0 : index
      %c0_46 = arith.constant 0 : index
      %c0_47 = arith.constant 0 : index
      %94 = vector.load %arg8[%c0_45, %c0_46, %c0_47] : memref<2x8x256xf32, #tpu.memory_space<vmem>>, vector<2x8x256xf32>
      tpu.vector_store %arg8[%c0_45, %c0_46, %c0_47], %93 {strides = array<i32>} : memref<2x8x256xf32, #tpu.memory_space<vmem>>, vector<2x8x256xf32>,
    } else {
    }
    return
  }
  func.func @transform_0(%arg0: i32, %arg1: i32) -> (i32, i32, i32) {
    %c0_i32 = arith.constant 0 : i32
    %c0_i32_0 = arith.constant 0 : i32
    %c0_i32_1 = arith.constant 0 : i32
    return %arg0, %c0_i32, %c0_i32_0 : i32, i32, i32
  }
  func.func @transform_1(%arg0: i32, %arg1: i32) -> (i32, i32, i32) {
    %c0_i32 = arith.constant 0 : i32
    %c0_i32_0 = arith.constant 0 : i32
    %c0_i32_1 = arith.constant 0 : i32
    return %arg0, %c0_i32, %c0_i32_0 : i32, i32, i32
  }
  func.func @transform_2(%arg0: i32, %arg1: i32) -> (i32, i32, i32) {
    %c0_i32 = arith.constant 0 : i32
    %c0_i32_0 = arith.constant 0 : i32
    %c0_i32_1 = arith.constant 0 : i32
    %c0_i32_2 = arith.constant 0 : i32
    return %c0_i32, %c0_i32_0, %c0_i32_1 : i32, i32, i32
  }
  func.func @transform_3(%arg0: i32, %arg1: i32) -> (i32, i32, i32) {
    %c0_i32 = arith.constant 0 : i32
    %c0_i32_0 = arith.constant 0 : i32
    %c0_i32_1 = arith.constant 0 : i32
    %c0_i32_2 = arith.constant 0 : i32
    return %c0_i32, %c0_i32_0, %c0_i32_1 : i32, i32, i32
  }
  func.func @transform_4(%arg0: i32, %arg1: i32) -> (i32, i32, i32) {
    %c0_i32 = arith.constant 0 : i32
    %c0_i32_0 = arith.constant 0 : i32
    %c0_i32_1 = arith.constant 0 : i32
    %c0_i32_2 = arith.constant 0 : i32
    return %c0_i32, %c0_i32_0, %c0_i32_1 : i32, i32, i32
  }
  func.func @transform_5(%arg0: i32, %arg1: i32) -> (i32, i32, i32) {
    %c0_i32 = arith.constant 0 : i32
    %c0_i32_0 = arith.constant 0 : i32
    %c0_i32_1 = arith.constant 0 : i32
    %c0_i32_2 = arith.constant 0 : i32
    return %c0_i32, %c0_i32_0, %c0_i32_1 : i32, i32, i32
  }
  func.func @transform_6(%arg0: i32, %arg1: i32) -> (i32, i32, i32) {
    %c0_i32 = arith.constant 0 : i32
    %c0_i32_0 = arith.constant 0 : i32
    %c0_i32_1 = arith.constant 0 : i32
    return %arg0, %c0_i32, %c0_i32_0 : i32, i32, i32
  }
}

</mosaic_0001>

<llo_original>
// kernel: tpu_custom_call.1
$region0: #{tpu_custom_call.1}
  #allocation0 [shape = 'u32[]', space=smem, size = 0x4, offset = 0x4, fixed_abs, tag = 'smem constant byte address 0x4 - core index']
  #allocation1 [shape = 'u32[144,128]{1,0:T(1,128)}', space=vmem, size = 0x12000, scoped, tag = 'internal scratch']
  #allocation2 [shape = 'f32[2,8,256]{2,1,0:T(8,128)}', space=vmem, size = 0x4000, scoped, tag = 'scratch operand']
  %s0 = inlined_call_operand.hbm [shape: f32[2,8,256], index: 0, kind: input, shape index: {}]
  %s1 = inlined_call_operand.hbm [shape: f32[2,32,256], index: 1, kind: input, shape index: {}]
  %s2 = inlined_call_operand.hbm [shape: f32[1,256,256], index: 2, kind: input, shape index: {}]
  %s3 = inlined_call_operand.hbm [shape: f32[1,256,256], index: 3, kind: input, shape index: {}]
  %s4 = inlined_call_operand.hbm [shape: f32[1,256,256], index: 4, kind: input, shape index: {}]
  %s5 = inlined_call_operand.hbm [shape: f32[1,256,256], index: 5, kind: input, shape index: {}]
  %s6 = inlined_call_operand.hbm [shape: f32[2,8,256], index: 6, kind: output, shape index: {}]
  %s7 = sld [smem:[#allocation0]]
  $region66: #{tpu_custom_call.1} parent=0
    _
  %s9 = ssub.s32 1, %s7
  %s10 = scalar_select 0, %s9, %s7
  $region1: #{tpu_custom_call.1} parent=0
    #allocation3 [shape = 'u8[16384]{0}', space=vmem, size = 0x4000, scoped, tag = 'input window, operand 0, single buffered']
    #allocation4 [shape = 's32[1]{0}', space=sflag, size = 0x4, scoped, tag = 'scoped memory for tpu_custom_call.1']
    #allocation5 [shape = 's32[1]{0}', space=sflag, size = 0x4, scoped, tag = 'scoped memory for tpu_custom_call.1']
    #allocation6 [shape = 'u8[65536]{0}', space=vmem, size = 0x10000, scoped, tag = 'input window, operand 1, single buffered']
    #allocation7 [shape = 's32[1]{0}', space=sflag, size = 0x4, scoped, tag = 'scoped memory for tpu_custom_call.1']
    #allocation8 [shape = 'u8[262144]{0}', space=vmem, size = 0x40000, scoped, tag = 'input window, operand 2, single buffered']
    #allocation9 [shape = 'u8[262144]{0}', space=vmem, size = 0x40000, scoped, tag = 'input window, operand 3, single buffered']
    #allocation10 [shape = 's32[1]{0}', space=sflag, size = 0x4, scoped, tag = 'scoped memory for tpu_custom_call.1']
    #allocation11 [shape = 'u8[262144]{0}', space=vmem, size = 0x40000, scoped, tag = 'input window, operand 4, single buffered']
    #allocation12 [shape = 'u8[262144]{0}', space=vmem, size = 0x40000, scoped, tag = 'input window, operand 5, single buffered']
    #allocation13 [shape = 's32[1]{0}', space=sflag, size = 0x4, scoped, tag = 'scoped memory for tpu_custom_call.1']
    #allocation14 [shape = 'u8[16384]{0}', space=vmem, size = 0x4000, scoped, tag = 'output window, operand 0, single buffered']
    %11 = vsyncpa [#allocation4], 0
    %12 = vsyncpa [#allocation7], 0
    %13 = vsyncpa [#allocation10], 0
    %14 = vsyncpa [#allocation13], 0
    %15 = vsyncpa [#allocation5], 0
    // Predicated region
    $region2: #{tpu_custom_call.1} parent=1 // pred_check
      _
    $region3: #{tpu_custom_call.1} parent=1 // pred_check_branch
      %17 = sbr.rel (0) target = $region5
    $region4: #{tpu_custom_call.1} parent=1 // pred_region
      %s19 = ssub.s32 512, 512
      %20 = vsyncadd [#allocation4], %s19
      %s21 = sshll.u32 [#allocation3], 4
      %s22 = int_to_ptr.vmem [resolvable:$true] %s21
      %27 = dma.hbm_to_vmem [thread:$0]  %s0, 512, %s22, [#allocation4], 256, 256, 16
    $region5: #{tpu_custom_call.1} parent=1 // pred_fallthru
      _
    // Predicated region
    $region6: #{tpu_custom_call.1} parent=1 // pred_check
      _
    $region7: #{tpu_custom_call.1} parent=1 // pred_check_branch
      %29 = sbr.rel (0) target = $region9
    $region8: #{tpu_custom_call.1} parent=1 // pred_region
      %s31 = ssub.s32 2048, 2048
      %32 = vsyncadd [#allocation7], %s31
      %s33 = sshll.u32 [#allocation6], 4
      %s34 = int_to_ptr.vmem [resolvable:$true] %s33
      %39 = dma.hbm_to_vmem [thread:$0]  %s1, 2048, %s34, [#allocation7], 256, 256, 16
    $region9: #{tpu_custom_call.1} parent=1 // pred_fallthru
      _
    // Predicated region
    $region10: #{tpu_custom_call.1} parent=1 // pred_check
      _
    $region11: #{tpu_custom_call.1} parent=1 // pred_check_branch
      %41 = sbr.rel (0) target = $region13
    $region12: #{tpu_custom_call.1} parent=1 // pred_region
      %s43 = ssub.s32 8192, 8192
      %44 = vsyncadd [#allocation7], %s43
      %s45 = sshll.u32 [#allocation8], 4
      %s46 = int_to_ptr.vmem [resolvable:$true] %s45
      %51 = dma.hbm_to_vmem [thread:$0]  %s2, 8192, %s46, [#allocation7], 256, 256, 16
    $region13: #{tpu_custom_call.1} parent=1 // pred_fallthru
      _
    // Predicated region
    $region14: #{tpu_custom_call.1} parent=1 // pred_check
      _
    $region15: #{tpu_custom_call.1} parent=1 // pred_check_branch
      %53 = sbr.rel (0) target = $region17
    $region16: #{tpu_custom_call.1} parent=1 // pred_region
      %s55 = ssub.s32 8192, 8192
      %56 = vsyncadd [#allocation10], %s55
      %s57 = sshll.u32 [#allocation9], 4
      %s58 = int_to_ptr.vmem [resolvable:$true] %s57
      %63 = dma.hbm_to_vmem [thread:$0]  %s3, 8192, %s58, [#allocation10], 256, 256, 16
    $region17: #{tpu_custom_call.1} parent=1 // pred_fallthru
      _
    // Predicated region
    $region18: #{tpu_custom_call.1} parent=1 // pred_check
      _
    $region19: #{tpu_custom_call.1} parent=1 // pred_check_branch
      %65 = sbr.rel (0) target = $region21
    $region20: #{tpu_custom_call.1} parent=1 // pred_region
      %s67 = ssub.s32 8192, 8192
      %68 = vsyncadd [#allocation10], %s67
      %s69 = sshll.u32 [#allocation11], 4
      %s70 = int_to_ptr.vmem [resolvable:$true] %s69
      %75 = dma.hbm_to_vmem [thread:$0]  %s4, 8192, %s70, [#allocation10], 256, 256, 16
    $region21: #{tpu_custom_call.1} parent=1 // pred_fallthru
      _
    // Predicated region
    $region22: #{tpu_custom_call.1} parent=1 // pred_check
      _
    $region23: #{tpu_custom_call.1} parent=1 // pred_check_branch
      %77 = sbr.rel (0) target = $region25
    $region24: #{tpu_custom_call.1} parent=1 // pred_region
      %s79 = ssub.s32 8192, 8192
      %80 = vsyncadd [#allocation13], %s79
      %s81 = sshll.u32 [#allocation12], 4
      %s82 = int_to_ptr.vmem [resolvable:$true] %s81
      %87 = dma.hbm_to_vmem [thread:$0]  %s5, 8192, %s82, [#allocation13], 256, 256, 16
    $region25: #{tpu_custom_call.1} parent=1 // pred_fallthru
      _
    // Predicated region
    $region26: #{tpu_custom_call.1} parent=1 // pred_check
      _
    $region27: #{tpu_custom_call.1} parent=1 // pred_check_branch
      %89 = sbr.rel (0) target = $region29
    $region28: #{tpu_custom_call.1} parent=1 // pred_region
      %90 = dma.done [#allocation4], 512
    $region29: #{tpu_custom_call.1} parent=1 // pred_fallthru
      _
    // Predicated region
    $region30: #{tpu_custom_call.1} parent=1 // pred_check
      _
    $region31: #{tpu_custom_call.1} parent=1 // pred_check_branch
      %92 = sbr.rel (0) target = $region33
    $region32: #{tpu_custom_call.1} parent=1 // pred_region
      %93 = dma.done [#allocation7], 2048
    $region33: #{tpu_custom_call.1} parent=1 // pred_fallthru
      _
    // Predicated region
    $region34: #{tpu_custom_call.1} parent=1 // pred_check
      _
    $region35: #{tpu_custom_call.1} parent=1 // pred_check_branch
      %95 = sbr.rel (0) target = $region37
    $region36: #{tpu_custom_call.1} parent=1 // pred_region
      %96 = dma.done [#allocation7], 8192
    $region37: #{tpu_custom_call.1} parent=1 // pred_fallthru
      _
    // Predicated region
    $region38: #{tpu_custom_call.1} parent=1 // pred_check
      _
    $region39: #{tpu_custom_call.1} parent=1 // pred_check_branch
      %98 = sbr.rel (0) target = $region41
    $region40: #{tpu_custom_call.1} parent=1 // pred_region
      %99 = dma.done [#allocation10], 8192
    $region41: #{tpu_custom_call.1} parent=1 // pred_fallthru
      _
    // Predicated region
    $region42: #{tpu_custom_call.1} parent=1 // pred_check
      _
    $region43: #{tpu_custom_call.1} parent=1 // pred_check_branch
      %101 = sbr.rel (0) target = $region45
    $region44: #{tpu_custom_call.1} parent=1 // pred_region
      %102 = dma.done [#allocation10], 8192
    $region45: #{tpu_custom_call.1} parent=1 // pred_fallthru
      _
    // Predicated region
    $region46: #{tpu_custom_call.1} parent=1 // pred_check
      _
    $region47: #{tpu_custom_call.1} parent=1 // pred_check_branch
      %104 = sbr.rel (0) target = $region49
    $region48: #{tpu_custom_call.1} parent=1 // pred_region
      %105 = dma.done [#allocation13], 8192
    $region49: #{tpu_custom_call.1} parent=1 // pred_fallthru
      _
    %p106 = scmp.eq.s32.totalorder 0, 0
    // Predicated region
    $region50: #{tpu_custom_call.1} parent=1 // pred_check
      %p107 = pneg %p106
    $region51: #{tpu_custom_call.1} parent=1 // pred_check_branch
      %109 = sbr.rel (%p107) target = $region53
    $region52: #{tpu_custom_call.1} parent=1 // pred_region
      %110 = vst [vmem:[#allocation2] sm:$0xff] 0.0
      %111 = vst [vmem:[#allocation2 + $0x8] sm:$0xff] 0.0
      %112 = vst [vmem:[#allocation2 + $0x10] sm:$0xff] 0.0
      %113 = vst [vmem:[#allocation2 + $0x18] sm:$0xff] 0.0
    $region53: #{tpu_custom_call.1} parent=1 // pred_fallthru
      _
    %v114 = vld [vmem:[#allocation3] sm:$0xff]
    %v115 = vld [vmem:[#allocation3 + $0x8] sm:$0xff]
    %v116 = vld [vmem:[#allocation3 + $0x10] sm:$0xff]
    %v117 = vld [vmem:[#allocation3 + $0x18] sm:$0xff]
    %v118 = vld [vmem:[#allocation6] sm:$0xff]
    %v119 = vld [vmem:[#allocation6 + $0x8] sm:$0xff]
    %v120 = vld [vmem:[#allocation6 + $0x10] sm:$0xff]
    %v121 = vld [vmem:[#allocation6 + $0x18] sm:$0xff]
    %v122 = vld [vmem:[#allocation6 + $0x20] sm:$0xff]
    %v123 = vld [vmem:[#allocation6 + $0x28] sm:$0xff]
    %v124 = vld [vmem:[#allocation6 + $0x30] sm:$0xff]
    %v125 = vld [vmem:[#allocation6 + $0x38] sm:$0xff]
    %v126 = vld [vmem:[#allocation6 + $0x40] sm:$0xff]
    %v127 = vld [vmem:[#allocation6 + $0x48] sm:$0xff]
    %v128 = vld [vmem:[#allocation6 + $0x50] sm:$0xff]
    %v129 = vld [vmem:[#allocation6 + $0x58] sm:$0xff]
    %v130 = vld [vmem:[#allocation6 + $0x60] sm:$0xff]
    %v131 = vld [vmem:[#allocation6 + $0x68] sm:$0xff]
    %v132 = vld [vmem:[#allocation6 + $0x70] sm:$0xff]
    %v133 = vld [vmem:[#allocation6 + $0x78] sm:$0xff]
    %s134 = smul.u32 0, 64
    %s135 = smul.addr %s134, 8
    %s136 = scalar_lea.vmem [#allocation8], %s135
    %v137 = vld [vmem:[%s136] sm:$0xff]
    %v138 = vld [vmem:[%s136 + $0x8] sm:$0xff]
    %v139 = vld [vmem:[%s136 + $0x10] sm:$0xff]
    %v140 = vld [vmem:[%s136 + $0x18] sm:$0xff]
    %v141 = vld [vmem:[%s136 + $0x20] sm:$0xff]
    %v142 = vld [vmem:[%s136 + $0x28] sm:$0xff]
    %v143 = vld [vmem:[%s136 + $0x30] sm:$0xff]
    %v144 = vld [vmem:[%s136 + $0x38] sm:$0xff]
    %v145 = vld [vmem:[%s136 + $0x40] sm:$0xff]
    %v146 = vld [vmem:[%s136 + $0x48] sm:$0xff]
    %v147 = vld [vmem:[%s136 + $0x50] sm:$0xff]
    %v148 = vld [vmem:[%s136 + $0x58] sm:$0xff]
    %v149 = vld [vmem:[%s136 + $0x60] sm:$0xff]
    %v150 = vld [vmem:[%s136 + $0x68] sm:$0xff]
    %v151 = vld [vmem:[%s136 + $0x70] sm:$0xff]
    %v152 = vld [vmem:[%s136 + $0x78] sm:$0xff]
    %v153 = vld [vmem:[%s136 + $0x80] sm:$0xff]
    %v154 = vld [vmem:[%s136 + $0x88] sm:$0xff]
    %v155 = vld [vmem:[%s136 + $0x90] sm:$0xff]
    %v156 = vld [vmem:[%s136 + $0x98] sm:$0xff]
    %v157 = vld [vmem:[%s136 + $0xa0] sm:$0xff]
    %v158 = vld [vmem:[%s136 + $0xa8] sm:$0xff]
    %v159 = vld [vmem:[%s136 + $0xb0] sm:$0xff]
    %v160 = vld [vmem:[%s136 + $0xb8] sm:$0xff]
    %v161 = vld [vmem:[%s136 + $0xc0] sm:$0xff]
    %v162 = vld [vmem:[%s136 + $0xc8] sm:$0xff]
    %v163 = vld [vmem:[%s136 + $0xd0] sm:$0xff]
    %v164 = vld [vmem:[%s136 + $0xd8] sm:$0xff]
    %v165 = vld [vmem:[%s136 + $0xe0] sm:$0xff]
    %v166 = vld [vmem:[%s136 + $0xe8] sm:$0xff]
    %v167 = vld [vmem:[%s136 + $0xf0] sm:$0xff]
    %v168 = vld [vmem:[%s136 + $0xf8] sm:$0xff]
    %v169 = vld [vmem:[%s136 + $0x100] sm:$0xff]
    %v170 = vld [vmem:[%s136 + $0x108] sm:$0xff]
    %v171 = vld [vmem:[%s136 + $0x110] sm:$0xff]
    %v172 = vld [vmem:[%s136 + $0x118] sm:$0xff]
    %v173 = vld [vmem:[%s136 + $0x120] sm:$0xff]
    %v174 = vld [vmem:[%s136 + $0x128] sm:$0xff]
    %v175 = vld [vmem:[%s136 + $0x130] sm:$0xff]
    %v176 = vld [vmem:[%s136 + $0x138] sm:$0xff]
    %v177 = vld [vmem:[%s136 + $0x140] sm:$0xff]
    %v178 = vld [vmem:[%s136 + $0x148] sm:$0xff]
    %v179 = vld [vmem:[%s136 + $0x150] sm:$0xff]
    %v180 = vld [vmem:[%s136 + $0x158] sm:$0xff]
    %v181 = vld [vmem:[%s136 + $0x160] sm:$0xff]
    %v182 = vld [vmem:[%s136 + $0x168] sm:$0xff]
    %v183 = vld [vmem:[%s136 + $0x170] sm:$0xff]
    %v184 = vld [vmem:[%s136 + $0x178] sm:$0xff]
    %v185 = vld [vmem:[%s136 + $0x180] sm:$0xff]
    %v186 = vld [vmem:[%s136 + $0x188] sm:$0xff]
    %v187 = vld [vmem:[%s136 + $0x190] sm:$0xff]
    %v188 = vld [vmem:[%s136 + $0x198] sm:$0xff]
    %v189 = vld [vmem:[%s136 + $0x1a0] sm:$0xff]
    %v190 = vld [vmem:[%s136 + $0x1a8] sm:$0xff]
    %v191 = vld [vmem:[%s136 + $0x1b0] sm:$0xff]
    %v192 = vld [vmem:[%s136 + $0x1b8] sm:$0xff]
    %v193 = vld [vmem:[%s136 + $0x1c0] sm:$0xff]
    %v194 = vld [vmem:[%s136 + $0x1c8] sm:$0xff]
    %v195 = vld [vmem:[%s136 + $0x1d0] sm:$0xff]
    %v196 = vld [vmem:[%s136 + $0x1d8] sm:$0xff]
    %v197 = vld [vmem:[%s136 + $0x1e0] sm:$0xff]
    %v198 = vld [vmem:[%s136 + $0x1e8] sm:$0xff]
    %v199 = vld [vmem:[%s136 + $0x1f0] sm:$0xff]
    %v200 = vld [vmem:[%s136 + $0x1f8] sm:$0xff]
    %s201 = smul.addr %s134, 8
    %s202 = scalar_lea.vmem [#allocation9], %s201
    %v203 = vld [vmem:[%s202] sm:$0xff]
    %v204 = vld [vmem:[%s202 + $0x8] sm:$0xff]
    %v205 = vld [vmem:[%s202 + $0x10] sm:$0xff]
    %v206 = vld [vmem:[%s202 + $0x18] sm:$0xff]
    %v207 = vld [vmem:[%s202 + $0x20] sm:$0xff]
    %v208 = vld [vmem:[%s202 + $0x28] sm:$0xff]
    %v209 = vld [vmem:[%s202 + $0x30] sm:$0xff]
    %v210 = vld [vmem:[%s202 + $0x38] sm:$0xff]
    %v211 = vld [vmem:[%s202 + $0x40] sm:$0xff]
    %v212 = vld [vmem:[%s202 + $0x48] sm:$0xff]
    %v213 = vld [vmem:[%s202 + $0x50] sm:$0xff]
    %v214 = vld [vmem:[%s202 + $0x58] sm:$0xff]
    %v215 = vld [vmem:[%s202 + $0x60] sm:$0xff]
    %v216 = vld [vmem:[%s202 + $0x68] sm:$0xff]
    %v217 = vld [vmem:[%s202 + $0x70] sm:$0xff]
    %v218 = vld [vmem:[%s202 + $0x78] sm:$0xff]
    %v219 = vld [vmem:[%s202 + $0x80] sm:$0xff]
    %v220 = vld [vmem:[%s202 + $0x88] sm:$0xff]
    %v221 = vld [vmem:[%s202 + $0x90] sm:$0xff]
    %v222 = vld [vmem:[%s202 + $0x98] sm:$0xff]
    %v223 = vld [vmem:[%s202 + $0xa0] sm:$0xff]
    %v224 = vld [vmem:[%s202 + $0xa8] sm:$0xff]
    %v225 = vld [vmem:[%s202 + $0xb0] sm:$0xff]
    %v226 = vld [vmem:[%s202 + $0xb8] sm:$0xff]
    %v227 = vld [vmem:[%s202 + $0xc0] sm:$0xff]
    %v228 = vld [vmem:[%s202 + $0xc8] sm:$0xff]
    %v229 = vld [vmem:[%s202 + $0xd0] sm:$0xff]
    %v230 = vld [vmem:[%s202 + $0xd8] sm:$0xff]
    %v231 = vld [vmem:[%s202 + $0xe0] sm:$0xff]
    %v232 = vld [vmem:[%s202 + $0xe8] sm:$0xff]
    %v233 = vld [vmem:[%s202 + $0xf0] sm:$0xff]
    %v234 = vld [vmem:[%s202 + $0xf8] sm:$0xff]
    %v235 = vld [vmem:[%s202 + $0x100] sm:$0xff]
    %v236 = vld [vmem:[%s202 + $0x108] sm:$0xff]
    %v237 = vld [vmem:[%s202 + $0x110] sm:$0xff]
    %v238 = vld [vmem:[%s202 + $0x118] sm:$0xff]
    %v239 = vld [vmem:[%s202 + $0x120] sm:$0xff]
    %v240 = vld [vmem:[%s202 + $0x128] sm:$0xff]
    %v241 = vld [vmem:[%s202 + $0x130] sm:$0xff]
    %v242 = vld [vmem:[%s202 + $0x138] sm:$0xff]
    %v243 = vld [vmem:[%s202 + $0x140] sm:$0xff]
    %v244 = vld [vmem:[%s202 + $0x148] sm:$0xff]
    %v245 = vld [vmem:[%s202 + $0x150] sm:$0xff]
    %v246 = vld [vmem:[%s202 + $0x158] sm:$0xff]
    %v247 = vld [vmem:[%s202 + $0x160] sm:$0xff]
    %v248 = vld [vmem:[%s202 + $0x168] sm:$0xff]
    %v249 = vld [vmem:[%s202 + $0x170] sm:$0xff]
    %v250 = vld [vmem:[%s202 + $0x178] sm:$0xff]
    %v251 = vld [vmem:[%s202 + $0x180] sm:$0xff]
    %v252 = vld [vmem:[%s202 + $0x188] sm:$0xff]
    %v253 = vld [vmem:[%s202 + $0x190] sm:$0xff]
    %v254 = vld [vmem:[%s202 + $0x198] sm:$0xff]
    %v255 = vld [vmem:[%s202 + $0x1a0] sm:$0xff]
    %v256 = vld [vmem:[%s202 + $0x1a8] sm:$0xff]
    %v257 = vld [vmem:[%s202 + $0x1b0] sm:$0xff]
    %v258 = vld [vmem:[%s202 + $0x1b8] sm:$0xff]
    %v259 = vld [vmem:[%s202 + $0x1c0] sm:$0xff]
    %v260 = vld [vmem:[%s202 + $0x1c8] sm:$0xff]
    %v261 = vld [vmem:[%s202 + $0x1d0] sm:$0xff]
    %v262 = vld [vmem:[%s202 + $0x1d8] sm:$0xff]
    %v263 = vld [vmem:[%s202 + $0x1e0] sm:$0xff]
    %v264 = vld [vmem:[%s202 + $0x1e8] sm:$0xff]
    %v265 = vld [vmem:[%s202 + $0x1f0] sm:$0xff]
    %v266 = vld [vmem:[%s202 + $0x1f8] sm:$0xff]
    %s267 = smul.addr %s134, 8
    %s268 = scalar_lea.vmem [#allocation11], %s267
    %v269 = vld [vmem:[%s268] sm:$0xff]
    %v270 = vld [vmem:[%s268 + $0x8] sm:$0xff]
    %v271 = vld [vmem:[%s268 + $0x10] sm:$0xff]
    %v272 = vld [vmem:[%s268 + $0x18] sm:$0xff]
    %v273 = vld [vmem:[%s268 + $0x20] sm:$0xff]
    %v274 = vld [vmem:[%s268 + $0x28] sm:$0xff]
    %v275 = vld [vmem:[%s268 + $0x30] sm:$0xff]
    %v276 = vld [vmem:[%s268 + $0x38] sm:$0xff]
    %v277 = vld [vmem:[%s268 + $0x40] sm:$0xff]
    %v278 = vld [vmem:[%s268 + $0x48] sm:$0xff]
    %v279 = vld [vmem:[%s268 + $0x50] sm:$0xff]
    %v280 = vld [vmem:[%s268 + $0x58] sm:$0xff]
    %v281 = vld [vmem:[%s268 + $0x60] sm:$0xff]
    %v282 = vld [vmem:[%s268 + $0x68] sm:$0xff]
    %v283 = vld [vmem:[%s268 + $0x70] sm:$0xff]
    %v284 = vld [vmem:[%s268 + $0x78] sm:$0xff]
    %v285 = vld [vmem:[%s268 + $0x80] sm:$0xff]
    %v286 = vld [vmem:[%s268 + $0x88] sm:$0xff]
    %v287 = vld [vmem:[%s268 + $0x90] sm:$0xff]
    %v288 = vld [vmem:[%s268 + $0x98] sm:$0xff]
    %v289 = vld [vmem:[%s268 + $0xa0] sm:$0xff]
    %v290 = vld [vmem:[%s268 + $0xa8] sm:$0xff]
    %v291 = vld [vmem:[%s268 + $0xb0] sm:$0xff]
    %v292 = vld [vmem:[%s268 + $0xb8] sm:$0xff]
    %v293 = vld [vmem:[%s268 + $0xc0] sm:$0xff]
    %v294 = vld [vmem:[%s268 + $0xc8] sm:$0xff]
    %v295 = vld [vmem:[%s268 + $0xd0] sm:$0xff]
    %v296 = vld [vmem:[%s268 + $0xd8] sm:$0xff]
    %v297 = vld [vmem:[%s268 + $0xe0] sm:$0xff]
    %v298 = vld [vmem:[%s268 + $0xe8] sm:$0xff]
    %v299 = vld [vmem:[%s268 + $0xf0] sm:$0xff]
    %v300 = vld [vmem:[%s268 + $0xf8] sm:$0xff]
    %v301 = vld [vmem:[%s268 + $0x100] sm:$0xff]
    %v302 = vld [vmem:[%s268 + $0x108] sm:$0xff]
    %v303 = vld [vmem:[%s268 + $0x110] sm:$0xff]
    %v304 = vld [vmem:[%s268 + $0x118] sm:$0xff]
    %v305 = vld [vmem:[%s268 + $0x120] sm:$0xff]
    %v306 = vld [vmem:[%s268 + $0x128] sm:$0xff]
    %v307 = vld [vmem:[%s268 + $0x130] sm:$0xff]
    %v308 = vld [vmem:[%s268 + $0x138] sm:$0xff]
    %v309 = vld [vmem:[%s268 + $0x140] sm:$0xff]
    %v310 = vld [vmem:[%s268 + $0x148] sm:$0xff]
    %v311 = vld [vmem:[%s268 + $0x150] sm:$0xff]
    %v312 = vld [vmem:[%s268 + $0x158] sm:$0xff]
    %v313 = vld [vmem:[%s268 + $0x160] sm:$0xff]
    %v314 = vld [vmem:[%s268 + $0x168] sm:$0xff]
    %v315 = vld [vmem:[%s268 + $0x170] sm:$0xff]
    %v316 = vld [vmem:[%s268 + $0x178] sm:$0xff]
    %v317 = vld [vmem:[%s268 + $0x180] sm:$0xff]
    %v318 = vld [vmem:[%s268 + $0x188] sm:$0xff]
    %v319 = vld [vmem:[%s268 + $0x190] sm:$0xff]
    %v320 = vld [vmem:[%s268 + $0x198] sm:$0xff]
    %v321 = vld [vmem:[%s268 + $0x1a0] sm:$0xff]
    %v322 = vld [vmem:[%s268 + $0x1a8] sm:$0xff]
    %v323 = vld [vmem:[%s268 + $0x1b0] sm:$0xff]
    %v324 = vld [vmem:[%s268 + $0x1b8] sm:$0xff]
    %v325 = vld [vmem:[%s268 + $0x1c0] sm:$0xff]
    %v326 = vld [vmem:[%s268 + $0x1c8] sm:$0xff]
    %v327 = vld [vmem:[%s268 + $0x1d0] sm:$0xff]
    %v328 = vld [vmem:[%s268 + $0x1d8] sm:$0xff]
    %v329 = vld [vmem:[%s268 + $0x1e0] sm:$0xff]
    %v330 = vld [vmem:[%s268 + $0x1e8] sm:$0xff]
    %v331 = vld [vmem:[%s268 + $0x1f0] sm:$0xff]
    %v332 = vld [vmem:[%s268 + $0x1f8] sm:$0xff]
    %s333 = smul.addr %s134, 8
    %s334 = scalar_lea.vmem [#allocation12], %s333
    %v335 = vld [vmem:[%s334] sm:$0xff]
    %v336 = vld [vmem:[%s334 + $0x8] sm:$0xff]
    %v337 = vld [vmem:[%s334 + $0x10] sm:$0xff]
    %v338 = vld [vmem:[%s334 + $0x18] sm:$0xff]
    %v339 = vld [vmem:[%s334 + $0x20] sm:$0xff]
    %v340 = vld [vmem:[%s334 + $0x28] sm:$0xff]
    %v341 = vld [vmem:[%s334 + $0x30] sm:$0xff]
    %v342 = vld [vmem:[%s334 + $0x38] sm:$0xff]
    %v343 = vld [vmem:[%s334 + $0x40] sm:$0xff]
    %v344 = vld [vmem:[%s334 + $0x48] sm:$0xff]
    %v345 = vld [vmem:[%s334 + $0x50] sm:$0xff]
    %v346 = vld [vmem:[%s334 + $0x58] sm:$0xff]
    %v347 = vld [vmem:[%s334 + $0x60] sm:$0xff]
    %v348 = vld [vmem:[%s334 + $0x68] sm:$0xff]
    %v349 = vld [vmem:[%s334 + $0x70] sm:$0xff]
    %v350 = vld [vmem:[%s334 + $0x78] sm:$0xff]
    %v351 = vld [vmem:[%s334 + $0x80] sm:$0xff]
    %v352 = vld [vmem:[%s334 + $0x88] sm:$0xff]
    %v353 = vld [vmem:[%s334 + $0x90] sm:$0xff]
    %v354 = vld [vmem:[%s334 + $0x98] sm:$0xff]
    %v355 = vld [vmem:[%s334 + $0xa0] sm:$0xff]
    %v356 = vld [vmem:[%s334 + $0xa8] sm:$0xff]
    %v357 = vld [vmem:[%s334 + $0xb0] sm:$0xff]
    %v358 = vld [vmem:[%s334 + $0xb8] sm:$0xff]
    %v359 = vld [vmem:[%s334 + $0xc0] sm:$0xff]
    %v360 = vld [vmem:[%s334 + $0xc8] sm:$0xff]
    %v361 = vld [vmem:[%s334 + $0xd0] sm:$0xff]
    %v362 = vld [vmem:[%s334 + $0xd8] sm:$0xff]
    %v363 = vld [vmem:[%s334 + $0xe0] sm:$0xff]
    %v364 = vld [vmem:[%s334 + $0xe8] sm:$0xff]
    %v365 = vld [vmem:[%s334 + $0xf0] sm:$0xff]
    %v366 = vld [vmem:[%s334 + $0xf8] sm:$0xff]
    %v367 = vld [vmem:[%s334 + $0x100] sm:$0xff]
    %v368 = vld [vmem:[%s334 + $0x108] sm:$0xff]
    %v369 = vld [vmem:[%s334 + $0x110] sm:$0xff]
    %v370 = vld [vmem:[%s334 + $0x118] sm:$0xff]
    %v371 = vld [vmem:[%s334 + $0x120] sm:$0xff]
    %v372 = vld [vmem:[%s334 + $0x128] sm:$0xff]
    %v373 = vld [vmem:[%s334 + $0x130] sm:$0xff]
    %v374 = vld [vmem:[%s334 + $0x138] sm:$0xff]
    %v375 = vld [vmem:[%s334 + $0x140] sm:$0xff]
    %v376 = vld [vmem:[%s334 + $0x148] sm:$0xff]
    %v377 = vld [vmem:[%s334 + $0x150] sm:$0xff]
    %v378 = vld [vmem:[%s334 + $0x158] sm:$0xff]
    %v379 = vld [vmem:[%s334 + $0x160] sm:$0xff]
    %v380 = vld [vmem:[%s334 + $0x168] sm:$0xff]
    %v381 = vld [vmem:[%s334 + $0x170] sm:$0xff]
    %v382 = vld [vmem:[%s334 + $0x178] sm:$0xff]
    %v383 = vld [vmem:[%s334 + $0x180] sm:$0xff]
    %v384 = vld [vmem:[%s334 + $0x188] sm:$0xff]
    %v385 = vld [vmem:[%s334 + $0x190] sm:$0xff]
    %v386 = vld [vmem:[%s334 + $0x198] sm:$0xff]
    %v387 = vld [vmem:[%s334 + $0x1a0] sm:$0xff]
    %v388 = vld [vmem:[%s334 + $0x1a8] sm:$0xff]
    %v389 = vld [vmem:[%s334 + $0x1b0] sm:$0xff]
    %v390 = vld [vmem:[%s334 + $0x1b8] sm:$0xff]
    %v391 = vld [vmem:[%s334 + $0x1c0] sm:$0xff]
    %v392 = vld [vmem:[%s334 + $0x1c8] sm:$0xff]
    %v393 = vld [vmem:[%s334 + $0x1d0] sm:$0xff]
    %v394 = vld [vmem:[%s334 + $0x1d8] sm:$0xff]
    %v395 = vld [vmem:[%s334 + $0x1e0] sm:$0xff]
    %v396 = vld [vmem:[%s334 + $0x1e8] sm:$0xff]
    %v397 = vld [vmem:[%s334 + $0x1f0] sm:$0xff]
    %v398 = vld [vmem:[%s334 + $0x1f8] sm:$0xff]
    %399 = vmatprep.subr.mxu0 %v138
    %400 = vmatpush1.msra.mxu0 %v137
    %401 = vmatprep.subr.mxu0 %v140
    %402 = vmatpush1.msra.mxu0 %v139
    %403 = vmatprep.subr.mxu0 %v142
    %404 = vmatpush1.msra.mxu0 %v141
    %405 = vmatprep.subr.mxu0 %v144
    %406 = vmatpush1.msra.mxu0 %v143
    %407 = vmatprep.subr.mxu0 %v146
    %408 = vmatpush1.msra.mxu0 %v145
    %409 = vmatprep.subr.mxu0 %v148
    %410 = vmatpush1.msra.mxu0 %v147
    %411 = vmatprep.subr.mxu0 %v150
    %412 = vmatpush1.msra.mxu0 %v149
    %413 = vmatprep.subr.mxu0 %v152
    %414 = vmatpush1.msra.mxu0 %v151
    %415 = vmatprep.subr.mxu0 %v154
    %416 = vmatpush1.msra.mxu0 %v153
    %417 = vmatprep.subr.mxu0 %v156
    %418 = vmatpush1.msra.mxu0 %v155
    %419 = vmatprep.subr.mxu0 %v158
    %420 = vmatpush1.msra.mxu0 %v157
    %421 = vmatprep.subr.mxu0 %v160
    %422 = vmatpush1.msra.mxu0 %v159
    %423 = vmatprep.subr.mxu0 %v162
    %424 = vmatpush1.msra.mxu0 %v161
    %425 = vmatprep.subr.mxu0 %v164
    %426 = vmatpush1.msra.mxu0 %v163
    %427 = vmatprep.subr.mxu0 %v166
    %428 = vmatpush1.msra.mxu0 %v165
    %429 = vmatprep.subr.mxu0 %v168
    %430 = vmatpush1.msra.mxu0 %v167
    %431 = vmatprep.subr.mxu0 %v170
    %432 = vmatpush1.msra.mxu0 %v169
    %433 = vmatprep.subr.mxu0 %v172
    %434 = vmatpush1.msra.mxu0 %v171
    %435 = vmatprep.subr.mxu0 %v174
    %436 = vmatpush1.msra.mxu0 %v173
    %437 = vmatprep.subr.mxu0 %v176
    %438 = vmatpush1.msra.mxu0 %v175
    %439 = vmatprep.subr.mxu0 %v178
    %440 = vmatpush1.msra.mxu0 %v177
    %441 = vmatprep.subr.mxu0 %v180
    %442 = vmatpush1.msra.mxu0 %v179
    %443 = vmatprep.subr.mxu0 %v182
    %444 = vmatpush1.msra.mxu0 %v181
    %445 = vmatprep.subr.mxu0 %v184
    %446 = vmatpush1.msra.mxu0 %v183
    %447 = vmatprep.subr.mxu0 %v186
    %448 = vmatpush1.msra.mxu0 %v185
    %449 = vmatprep.subr.mxu0 %v188
    %450 = vmatpush1.msra.mxu0 %v187
    %451 = vmatprep.subr.mxu0 %v190
    %452 = vmatpush1.msra.mxu0 %v189
    %453 = vmatprep.subr.mxu0 %v192
    %454 = vmatpush1.msra.mxu0 %v191
    %455 = vmatprep.subr.mxu0 %v194
    %456 = vmatpush1.msra.mxu0 %v193
    %457 = vmatprep.subr.mxu0 %v196
    %458 = vmatpush1.msra.mxu0 %v195
    %459 = vmatprep.subr.mxu0 %v198
    %460 = vmatpush1.msra.mxu0 %v197
    %461 = vmatprep.subr.mxu0 %v200
    %462 = vmatpush1.msra.mxu0 %v199
    %463 = vmatprep.mubr.f32.mxu0 %v115
    %464 = vmatmul.mubr.f32.gmra.mrb[0].mxu0 %v114
    %v465 = vpop.f32.mrb[0].mxu0
    %v466 = vadd.f32 0.0, %v465
    %v467 = vpop.f32.mrb[0].mxu0
    %v468 = vadd.f32 0.0, %v467
    %469 = vmatprep.mubr.f32.mxu0 %v117
    %470 = vmatmul.mubr.f32.gmra.mrb[0].mxu0 %v116
    %v471 = vpop.f32.mrb[0].mxu0
    %v472 = vadd.f32 0.0, %v471
    %v473 = vpop.f32.mrb[0].mxu0
    %v474 = vadd.f32 0.0, %v473
    %475 = vdwg.mxu0
    %v476 = vmul.f32 %v466, 0.125
    %v477 = vmul.f32 %v468, 0.125
    %v478 = vmul.f32 %v472, 0.125
    %v479 = vmul.f32 %v474, 0.125
    %480 = vmatprep.subr.mxu0 %v204
    %481 = vmatpush1.msra.mxu0 %v203
    %482 = vmatprep.subr.mxu0 %v206
    %483 = vmatpush1.msra.mxu0 %v205
    %484 = vmatprep.subr.mxu0 %v208
    %485 = vmatpush1.msra.mxu0 %v207
    %486 = vmatprep.subr.mxu0 %v210
    %487 = vmatpush1.msra.mxu0 %v209
    %488 = vmatprep.subr.mxu0 %v212
    %489 = vmatpush1.msra.mxu0 %v211
    %490 = vmatprep.subr.mxu0 %v214
    %491 = vmatpush1.msra.mxu0 %v213
    %492 = vmatprep.subr.mxu0 %v216
    %493 = vmatpush1.msra.mxu0 %v215
    %494 = vmatprep.subr.mxu0 %v218
    %495 = vmatpush1.msra.mxu0 %v217
    %496 = vmatprep.subr.mxu0 %v220
    %497 = vmatpush1.msra.mxu0 %v219
    %498 = vmatprep.subr.mxu0 %v222
    %499 = vmatpush1.msra.mxu0 %v221
    %500 = vmatprep.subr.mxu0 %v224
    %501 = vmatpush1.msra.mxu0 %v223
    %502 = vmatprep.subr.mxu0 %v226
    %503 = vmatpush1.msra.mxu0 %v225
    %504 = vmatprep.subr.mxu0 %v228
    %505 = vmatpush1.msra.mxu0 %v227
    %506 = vmatprep.subr.mxu0 %v230
    %507 = vmatpush1.msra.mxu0 %v229
    %508 = vmatprep.subr.mxu0 %v232
    %509 = vmatpush1.msra.mxu0 %v231
    %510 = vmatprep.subr.mxu0 %v234
    %511 = vmatpush1.msra.mxu0 %v233
    %512 = vmatprep.subr.mxu0 %v236
    %513 = vmatpush1.msra.mxu0 %v235
    %514 = vmatprep.subr.mxu0 %v238
    %515 = vmatpush1.msra.mxu0 %v237
    %516 = vmatprep.subr.mxu0 %v240
    %517 = vmatpush1.msra.mxu0 %v239
    %518 = vmatprep.subr.mxu0 %v242
    %519 = vmatpush1.msra.mxu0 %v241
    %520 = vmatprep.subr.mxu0 %v244
    %521 = vmatpush1.msra.mxu0 %v243
    %522 = vmatprep.subr.mxu0 %v246
    %523 = vmatpush1.msra.mxu0 %v245
    %524 = vmatprep.subr.mxu0 %v248
    %525 = vmatpush1.msra.mxu0 %v247
    %526 = vmatprep.subr.mxu0 %v250
    %527 = vmatpush1.msra.mxu0 %v249
    %528 = vmatprep.subr.mxu0 %v252
    %529 = vmatpush1.msra.mxu0 %v251
    %530 = vmatprep.subr.mxu0 %v254
    %531 = vmatpush1.msra.mxu0 %v253
    %532 = vmatprep.subr.mxu0 %v256
    %533 = vmatpush1.msra.mxu0 %v255
    %534 = vmatprep.subr.mxu0 %v258
    %535 = vmatpush1.msra.mxu0 %v257
    %536 = vmatprep.subr.mxu0 %v260
    %537 = vmatpush1.msra.mxu0 %v259
    %538 = vmatprep.subr.mxu0 %v262
    %539 = vmatpush1.msra.mxu0 %v261
    %540 = vmatprep.subr.mxu0 %v264
    %541 = vmatpush1.msra.mxu0 %v263
    %542 = vmatprep.subr.mxu0 %v266
    %543 = vmatpush1.msra.mxu0 %v265
    %544 = vmatprep.mubr.f32.mxu0 %v119
    %545 = vmatmul.mubr.f32.gmra.mrb[0].mxu0 %v118
    %v546 = vpop.f32.mrb[0].mxu0
    %v547 = vadd.f32 0.0, %v546
    %v548 = vpop.f32.mrb[0].mxu0
    %v549 = vadd.f32 0.0, %v548
    %550 = vmatprep.mubr.f32.mxu0 %v121
    %551 = vmatmul.mubr.f32.gmra.mrb[0].mxu0 %v120
    %v552 = vpop.f32.mrb[0].mxu0
    %v553 = vadd.f32 0.0, %v552
    %v554 = vpop.f32.mrb[0].mxu0
    %v555 = vadd.f32 0.0, %v554
    %556 = vmatprep.mubr.f32.mxu0 %v123
    %557 = vmatmul.mubr.f32.gmra.mrb[0].mxu0 %v122
    %v558 = vpop.f32.mrb[0].mxu0
    %v559 = vadd.f32 0.0, %v558
    %v560 = vpop.f32.mrb[0].mxu0
    %v561 = vadd.f32 0.0, %v560
    %562 = vmatprep.mubr.f32.mxu0 %v125
    %563 = vmatmul.mubr.f32.gmra.mrb[0].mxu0 %v124
    %v564 = vpop.f32.mrb[0].mxu0
    %v565 = vadd.f32 0.0, %v564
    %v566 = vpop.f32.mrb[0].mxu0
    %v567 = vadd.f32 0.0, %v566
    %568 = vmatprep.mubr.f32.mxu0 %v127
    %569 = vmatmul.mubr.f32.gmra.mrb[0].mxu0 %v126
    %v570 = vpop.f32.mrb[0].mxu0
    %v571 = vadd.f32 0.0, %v570
    %v572 = vpop.f32.mrb[0].mxu0
    %v573 = vadd.f32 0.0, %v572
    %574 = vmatprep.mubr.f32.mxu0 %v129
    %575 = vmatmul.mubr.f32.gmra.mrb[0].mxu0 %v128
    %v576 = vpop.f32.mrb[0].mxu0
    %v577 = vadd.f32 0.0, %v576
    %v578 = vpop.f32.mrb[0].mxu0
    %v579 = vadd.f32 0.0, %v578
    %580 = vmatprep.mubr.f32.mxu0 %v131
    %581 = vmatmul.mubr.f32.gmra.mrb[0].mxu0 %v130
    %v582 = vpop.f32.mrb[0].mxu0
    %v583 = vadd.f32 0.0, %v582
    %v584 = vpop.f32.mrb[0].mxu0
    %v585 = vadd.f32 0.0, %v584
    %586 = vmatprep.mubr.f32.mxu0 %v133
    %587 = vmatmul.mubr.f32.gmra.mrb[0].mxu0 %v132
    %v588 = vpop.f32.mrb[0].mxu0
    %v589 = vadd.f32 0.0, %v588
    %v590 = vpop.f32.mrb[0].mxu0
    %v591 = vadd.f32 0.0, %v590
    %592 = vdwg.mxu0
    %593 = vmatprep.subr.mxu0 %v270
    %594 = vmatpush1.msra.mxu0 %v269
    %595 = vmatprep.subr.mxu0 %v272
    %596 = vmatpush1.msra.mxu0 %v271
    %597 = vmatprep.subr.mxu0 %v274
    %598 = vmatpush1.msra.mxu0 %v273
    %599 = vmatprep.subr.mxu0 %v276
    %600 = vmatpush1.msra.mxu0 %v275
    %601 = vmatprep.subr.mxu0 %v278
    %602 = vmatpush1.msra.mxu0 %v277
    %603 = vmatprep.subr.mxu0 %v280
    %604 = vmatpush1.msra.mxu0 %v279
    %605 = vmatprep.subr.mxu0 %v282
    %606 = vmatpush1.msra.mxu0 %v281
    %607 = vmatprep.subr.mxu0 %v284
    %608 = vmatpush1.msra.mxu0 %v283
    %609 = vmatprep.subr.mxu0 %v286
    %610 = vmatpush1.msra.mxu0 %v285
    %611 = vmatprep.subr.mxu0 %v288
    %612 = vmatpush1.msra.mxu0 %v287
    %613 = vmatprep.subr.mxu0 %v290
    %614 = vmatpush1.msra.mxu0 %v289
    %615 = vmatprep.subr.mxu0 %v292
    %616 = vmatpush1.msra.mxu0 %v291
    %617 = vmatprep.subr.mxu0 %v294
    %618 = vmatpush1.msra.mxu0 %v293
    %619 = vmatprep.subr.mxu0 %v296
    %620 = vmatpush1.msra.mxu0 %v295
    %621 = vmatprep.subr.mxu0 %v298
    %622 = vmatpush1.msra.mxu0 %v297
    %623 = vmatprep.subr.mxu0 %v300
    %624 = vmatpush1.msra.mxu0 %v299
    %625 = vmatprep.subr.mxu0 %v302
    %626 = vmatpush1.msra.mxu0 %v301
    %627 = vmatprep.subr.mxu0 %v304
    %628 = vmatpush1.msra.mxu0 %v303
    %629 = vmatprep.subr.mxu0 %v306
    %630 = vmatpush1.msra.mxu0 %v305
    %631 = vmatprep.subr.mxu0 %v308
    %632 = vmatpush1.msra.mxu0 %v307
    %633 = vmatprep.subr.mxu0 %v310
    %634 = vmatpush1.msra.mxu0 %v309
    %635 = vmatprep.subr.mxu0 %v312
    %636 = vmatpush1.msra.mxu0 %v311
    %637 = vmatprep.subr.mxu0 %v314
    %638 = vmatpush1.msra.mxu0 %v313
    %639 = vmatprep.subr.mxu0 %v316
    %640 = vmatpush1.msra.mxu0 %v315
    %641 = vmatprep.subr.mxu0 %v318
    %642 = vmatpush1.msra.mxu0 %v317
    %643 = vmatprep.subr.mxu0 %v320
    %644 = vmatpush1.msra.mxu0 %v319
    %645 = vmatprep.subr.mxu0 %v322
    %646 = vmatpush1.msra.mxu0 %v321
    %647 = vmatprep.subr.mxu0 %v324
    %648 = vmatpush1.msra.mxu0 %v323
    %649 = vmatprep.subr.mxu0 %v326
    %650 = vmatpush1.msra.mxu0 %v325
    %651 = vmatprep.subr.mxu0 %v328
    %652 = vmatpush1.msra.mxu0 %v327
    %653 = vmatprep.subr.mxu0 %v330
    %654 = vmatpush1.msra.mxu0 %v329
    %655 = vmatprep.subr.mxu0 %v332
    %656 = vmatpush1.msra.mxu0 %v331
    %657 = vmatprep.mubr.f32.mxu0 %v119
    %658 = vmatmul.mubr.f32.gmra.mrb[0].mxu0 %v118
    %v659 = vpop.f32.mrb[0].mxu0
    %v660 = vadd.f32 0.0, %v659
    %v661 = vpop.f32.mrb[0].mxu0
    %v662 = vadd.f32 0.0, %v661
    %663 = vmatprep.mubr.f32.mxu0 %v121
    %664 = vmatmul.mubr.f32.gmra.mrb[0].mxu0 %v120
    %v665 = vpop.f32.mrb[0].mxu0
    %v666 = vadd.f32 0.0, %v665
    %v667 = vpop.f32.mrb[0].mxu0
    %v668 = vadd.f32 0.0, %v667
    %669 = vmatprep.mubr.f32.mxu0 %v123
    %670 = vmatmul.mubr.f32.gmra.mrb[0].mxu0 %v122
    %v671 = vpop.f32.mrb[0].mxu0
    %v672 = vadd.f32 0.0, %v671
    %v673 = vpop.f32.mrb[0].mxu0
    %v674 = vadd.f32 0.0, %v673
    %675 = vmatprep.mubr.f32.mxu0 %v125
    %676 = vmatmul.mubr.f32.gmra.mrb[0].mxu0 %v124
    %v677 = vpop.f32.mrb[0].mxu0
    %v678 = vadd.f32 0.0, %v677
    %v679 = vpop.f32.mrb[0].mxu0
    %v680 = vadd.f32 0.0, %v679
    %681 = vmatprep.mubr.f32.mxu0 %v127
    %682 = vmatmul.mubr.f32.gmra.mrb[0].mxu0 %v126
    %v683 = vpop.f32.mrb[0].mxu0
    %v684 = vadd.f32 0.0, %v683
    %v685 = vpop.f32.mrb[0].mxu0
    %v686 = vadd.f32 0.0, %v685
    %687 = vmatprep.mubr.f32.mxu0 %v129
    %688 = vmatmul.mubr.f32.gmra.mrb[0].mxu0 %v128
    %v689 = vpop.f32.mrb[0].mxu0
    %v690 = vadd.f32 0.0, %v689
    %v691 = vpop.f32.mrb[0].mxu0
    %v692 = vadd.f32 0.0, %v691
    %693 = vmatprep.mubr.f32.mxu0 %v131
    %694 = vmatmul.mubr.f32.gmra.mrb[0].mxu0 %v130
    %v695 = vpop.f32.mrb[0].mxu0
    %v696 = vadd.f32 0.0, %v695
    %v697 = vpop.f32.mrb[0].mxu0
    %v698 = vadd.f32 0.0, %v697
    %699 = vmatprep.mubr.f32.mxu0 %v133
    %700 = vmatmul.mubr.f32.gmra.mrb[0].mxu0 %v132
    %v701 = vpop.f32.mrb[0].mxu0
    %v702 = vadd.f32 0.0, %v701
    %v703 = vpop.f32.mrb[0].mxu0
    %v704 = vadd.f32 0.0, %v703
    %705 = vdwg.mxu0
    %vm706 = vcmask 523264
    %v708 = vsel %vm706, %v476, 0
    %v711 = vsel %vm706, %v547, 0
    %v714 = vsel %vm706, %v553, 0
    %v717 = vsel %vm706, %v559, 0
    %v720 = vsel %vm706, %v565, 0
    %722 = vmatprep.subr.mxu0 0.0
    %723 = vmatpush1.xpose.msra.mxu0 %v711
    %724 = vmatprep.subr.mxu0 0.0
    %725 = vmatpush1.xpose.msra.mxu0 %v714
    %726 = vmatprep.subr.mxu0 0.0
    %727 = vmatpush1.xpose.msra.mxu0 %v717
    %728 = vmatprep.subr.mxu0 0.0
    %729 = vmatpush1.xpose.msra.mxu0 %v720
    %730 = vmatprep.subr.mxu0 0.0
    %731 = vmatpush1.xpose.msra.mxu0 0.0
    %732 = vmatprep.subr.mxu0 0.0
    %733 = vmatpush1.xpose.msra.mxu0 0.0
    %734 = vmatprep.subr.mxu0 0.0
    %735 = vmatpush1.xpose.msra.mxu0 0.0
    %736 = vmatprep.subr.mxu0 0.0
    %737 = vmatpush1.xpose.msra.mxu0 0.0
    %738 = vmatprep.subr.mxu0 0.0
    %739 = vmatpush1.xpose.msra.mxu0 0.0
    %740 = vmatprep.subr.mxu0 0.0
    %741 = vmatpush1.xpose.msra.mxu0 0.0
    %742 = vmatprep.subr.mxu0 0.0
    %743 = vmatpush1.xpose.msra.mxu0 0.0
    %744 = vmatprep.subr.mxu0 0.0
    %745 = vmatpush1.xpose.msra.mxu0 0.0
    %746 = vmatprep.subr.mxu0 0.0
    %747 = vmatpush1.xpose.msra.mxu0 0.0
    %748 = vmatprep.subr.mxu0 0.0
    %749 = vmatpush1.xpose.msra.mxu0 0.0
    %750 = vmatprep.subr.mxu0 0.0
    %751 = vmatpush1.xpose.msra.mxu0 0.0
    %752 = vmatprep.subr.mxu0 0.0
    %753 = vmatpush1.xpose.msra.mxu0 0.0
    %754 = vmatprep.subr.mxu0 0.0
    %755 = vmatpush1.xpose.msra.mxu0 0.0
    %756 = vmatprep.subr.mxu0 0.0
    %757 = vmatpush1.xpose.msra.mxu0 0.0
    %758 = vmatprep.subr.mxu0 0.0
    %759 = vmatpush1.xpose.msra.mxu0 0.0
    %760 = vmatprep.subr.mxu0 0.0
    %761 = vmatpush1.xpose.msra.mxu0 0.0
    %762 = vmatprep.subr.mxu0 0.0
    %763 = vmatpush1.xpose.msra.mxu0 0.0
    %764 = vmatprep.subr.mxu0 0.0
    %765 = vmatpush1.xpose.msra.mxu0 0.0
    %766 = vmatprep.subr.mxu0 0.0
    %767 = vmatpush1.xpose.msra.mxu0 0.0
    %768 = vmatprep.subr.mxu0 0.0
    %769 = vmatpush1.xpose.msra.mxu0 0.0
    %770 = vmatprep.subr.mxu0 0.0
    %771 = vmatpush1.xpose.msra.mxu0 0.0
    %772 = vmatprep.subr.mxu0 0.0
    %773 = vmatpush1.xpose.msra.mxu0 0.0
    %774 = vmatprep.subr.mxu0 0.0
    %775 = vmatpush1.xpose.msra.mxu0 0.0
    %776 = vmatprep.subr.mxu0 0.0
    %777 = vmatpush1.xpose.msra.mxu0 0.0
    %778 = vmatprep.subr.mxu0 0.0
    %779 = vmatpush1.xpose.msra.mxu0 0.0
    %780 = vmatprep.subr.mxu0 0.0
    %781 = vmatpush1.xpose.msra.mxu0 0.0
    %782 = vmatprep.subr.mxu0 0.0
    %783 = vmatpush1.xpose.msra.mxu0 0.0
    %784 = vmatprep.subr.mxu0 0.0
    %785 = vmatpush1.xpose.msra.mxu0 0.0
    %786 = vmatprep.mubr.f32.mxu0 0.0
    %787 = vmatmul.mubr.f32.gmra.mrb[0].mxu0 %v708
    %v788 = vpop.f32.mrb[0].mxu0
    %v789 = vadd.f32 0.0, %v788
    %v790 = vpop.f32.mrb[0].mxu0
    %791 = vdwg.mxu0
    %v793 = vsel %vm706, %v478, 0
    %v796 = vsel %vm706, %v571, 0
    %v799 = vsel %vm706, %v577, 0
    %v802 = vsel %vm706, %v583, 0
    %v805 = vsel %vm706, %v589, 0
    %807 = vmatprep.subr.mxu0 0.0
    %808 = vmatpush1.xpose.msra.mxu0 %v796
    %809 = vmatprep.subr.mxu0 0.0
    %810 = vmatpush1.xpose.msra.mxu0 %v799
    %811 = vmatprep.subr.mxu0 0.0
    %812 = vmatpush1.xpose.msra.mxu0 %v802
    %813 = vmatprep.subr.mxu0 0.0
    %814 = vmatpush1.xpose.msra.mxu0 %v805
    %815 = vmatprep.subr.mxu0 0.0
    %816 = vmatpush1.xpose.msra.mxu0 0.0
    %817 = vmatprep.subr.mxu0 0.0
    %818 = vmatpush1.xpose.msra.mxu0 0.0
    %819 = vmatprep.subr.mxu0 0.0
    %820 = vmatpush1.xpose.msra.mxu0 0.0
    %821 = vmatprep.subr.mxu0 0.0
    %822 = vmatpush1.xpose.msra.mxu0 0.0
    %823 = vmatprep.subr.mxu0 0.0
    %824 = vmatpush1.xpose.msra.mxu0 0.0
    %825 = vmatprep.subr.mxu0 0.0
    %826 = vmatpush1.xpose.msra.mxu0 0.0
    %827 = vmatprep.subr.mxu0 0.0
    %828 = vmatpush1.xpose.msra.mxu0 0.0
    %829 = vmatprep.subr.mxu0 0.0
    %830 = vmatpush1.xpose.msra.mxu0 0.0
    %831 = vmatprep.subr.mxu0 0.0
    %832 = vmatpush1.xpose.msra.mxu0 0.0
    %833 = vmatprep.subr.mxu0 0.0
    %834 = vmatpush1.xpose.msra.mxu0 0.0
    %835 = vmatprep.subr.mxu0 0.0
    %836 = vmatpush1.xpose.msra.mxu0 0.0
    %837 = vmatprep.subr.mxu0 0.0
    %838 = vmatpush1.xpose.msra.mxu0 0.0
    %839 = vmatprep.subr.mxu0 0.0
    %840 = vmatpush1.xpose.msra.mxu0 0.0
    %841 = vmatprep.subr.mxu0 0.0
    %842 = vmatpush1.xpose.msra.mxu0 0.0
    %843 = vmatprep.subr.mxu0 0.0
    %844 = vmatpush1.xpose.msra.mxu0 0.0
    %845 = vmatprep.subr.mxu0 0.0
    %846 = vmatpush1.xpose.msra.mxu0 0.0
    %847 = vmatprep.subr.mxu0 0.0
    %848 = vmatpush1.xpose.msra.mxu0 0.0
    %849 = vmatprep.subr.mxu0 0.0
    %850 = vmatpush1.xpose.msra.mxu0 0.0
    %851 = vmatprep.subr.mxu0 0.0
    %852 = vmatpush1.xpose.msra.mxu0 0.0
    %853 = vmatprep.subr.mxu0 0.0
    %854 = vmatpush1.xpose.msra.mxu0 0.0
    %855 = vmatprep.subr.mxu0 0.0
    %856 = vmatpush1.xpose.msra.mxu0 0.0
    %857 = vmatprep.subr.mxu0 0.0
    %858 = vmatpush1.xpose.msra.mxu0 0.0
    %859 = vmatprep.subr.mxu0 0.0
    %860 = vmatpush1.xpose.msra.mxu0 0.0
    %861 = vmatprep.subr.mxu0 0.0
    %862 = vmatpush1.xpose.msra.mxu0 0.0
    %863 = vmatprep.subr.mxu0 0.0
    %864 = vmatpush1.xpose.msra.mxu0 0.0
    %865 = vmatprep.subr.mxu0 0.0
    %866 = vmatpush1.xpose.msra.mxu0 0.0
    %867 = vmatprep.subr.mxu0 0.0
    %868 = vmatpush1.xpose.msra.mxu0 0.0
    %869 = vmatprep.subr.mxu0 0.0
    %870 = vmatpush1.xpose.msra.mxu0 0.0
    %871 = vmatprep.mubr.f32.mxu0 0.0
    %872 = vmatmul.mubr.f32.gmra.mrb[0].mxu0 %v793
    %v873 = vpop.f32.mrb[0].mxu0
    %v874 = vadd.f32 0.0, %v873
    %v875 = vpop.f32.mrb[0].mxu0
    %876 = vdwg.mxu0
    %vm877 = vcmask 261120
    %v878 = vsel %vm877, %v789, -inf
    %879 = vmax.xlane.f32.xlu0 %v878
    %v880 = vpop.xlane.xlu0 %879
    %v881 = vsel %vm877, %v874, -inf
    %882 = vmax.xlane.f32.xlu0 %v881
    %v883 = vpop.xlane.xlu0 %882
    %v884 = vsub.f32 %v789, %v880
    %v885 = vsub.f32 %v874, %v883
    %v886 = vmul.f32 %v884, 1.442695
    %v887 = vpow.pop %v886
    %v888 = vmul.f32 %v885, 1.442695
    %v889 = vpow.pop %v888
    %v890 = vsel %vm877, %v887, 0.0
    %891 = vadd.xlane.f32.xlu0 %v890
    %v892 = vpop.xlane.xlu0 %891
    %v893 = vsel %vm877, %v889, 0.0
    %894 = vadd.xlane.f32.xlu0 %v893
    %v895 = vpop.xlane.xlu0 %894
    %v896 = vrcp.pop %v892
    %v897 = vmul.f32 %v887, %v896
    %v898 = vrcp.pop %v895
    %v899 = vmul.f32 %v889, %v898
    %v901 = vsel %vm877, %v897, 0
    %903 = vmatprep.subr.mxu0 0.0
    %904 = vmatpush1.msra.mxu0 %v660
    %905 = vmatprep.subr.mxu0 0.0
    %906 = vmatpush1.msra.mxu0 %v666
    %907 = vmatprep.subr.mxu0 0.0
    %908 = vmatpush1.msra.mxu0 %v672
    %909 = vmatprep.subr.mxu0 0.0
    %910 = vmatpush1.msra.mxu0 %v678
    %911 = vmatprep.subr.mxu0 0.0
    %912 = vmatpush1.msra.mxu0 0.0
    %913 = vmatprep.subr.mxu0 0.0
    %914 = vmatpush1.msra.mxu0 0.0
    %915 = vmatprep.subr.mxu0 0.0
    %916 = vmatpush1.msra.mxu0 0.0
    %917 = vmatprep.subr.mxu0 0.0
    %918 = vmatpush1.msra.mxu0 0.0
    %919 = vmatprep.subr.mxu0 0.0
    %920 = vmatpush1.msra.mxu0 0.0
    %921 = vmatprep.subr.mxu0 0.0
    %922 = vmatpush1.msra.mxu0 0.0
    %923 = vmatprep.subr.mxu0 0.0
    %924 = vmatpush1.msra.mxu0 0.0
    %925 = vmatprep.subr.mxu0 0.0
    %926 = vmatpush1.msra.mxu0 0.0
    %927 = vmatprep.subr.mxu0 0.0
    %928 = vmatpush1.msra.mxu0 0.0
    %929 = vmatprep.subr.mxu0 0.0
    %930 = vmatpush1.msra.mxu0 0.0
    %931 = vmatprep.subr.mxu0 0.0
    %932 = vmatpush1.msra.mxu0 0.0
    %933 = vmatprep.subr.mxu0 0.0
    %934 = vmatpush1.msra.mxu0 0.0
    %935 = vmatprep.subr.mxu0 0.0
    %936 = vmatpush1.msra.mxu0 0.0
    %937 = vmatprep.subr.mxu0 0.0
    %938 = vmatpush1.msra.mxu0 0.0
    %939 = vmatprep.subr.mxu0 0.0
    %940 = vmatpush1.msra.mxu0 0.0
    %941 = vmatprep.subr.mxu0 0.0
    %942 = vmatpush1.msra.mxu0 0.0
    %943 = vmatprep.subr.mxu0 0.0
    %944 = vmatpush1.msra.mxu0 0.0
    %945 = vmatprep.subr.mxu0 0.0
    %946 = vmatpush1.msra.mxu0 0.0
    %947 = vmatprep.subr.mxu0 0.0
    %948 = vmatpush1.msra.mxu0 0.0
    %949 = vmatprep.subr.mxu0 0.0
    %950 = vmatpush1.msra.mxu0 0.0
    %951 = vmatprep.subr.mxu0 0.0
    %952 = vmatpush1.msra.mxu0 0.0
    %953 = vmatprep.subr.mxu0 0.0
    %954 = vmatpush1.msra.mxu0 0.0
    %955 = vmatprep.subr.mxu0 0.0
    %956 = vmatpush1.msra.mxu0 0.0
    %957 = vmatprep.subr.mxu0 0.0
    %958 = vmatpush1.msra.mxu0 0.0
    %959 = vmatprep.subr.mxu0 0.0
    %960 = vmatpush1.msra.mxu0 0.0
    %961 = vmatprep.subr.mxu0 0.0
    %962 = vmatpush1.msra.mxu0 0.0
    %963 = vmatprep.subr.mxu0 0.0
    %964 = vmatpush1.msra.mxu0 0.0
    %965 = vmatprep.subr.mxu0 0.0
    %966 = vmatpush1.msra.mxu0 0.0
    %967 = vmatprep.mubr.f32.mxu0 0.0
    %968 = vmatmul.mubr.f32.gmra.mrb[0].mxu0 %v901
    %v969 = vpop.f32.mrb[0].mxu0
    %v970 = vadd.f32 0.0, %v969
    %v971 = vpop.f32.mrb[0].mxu0
    %972 = vdwg.mxu0
    %v974 = vsel %vm877, %v899, 0
    %976 = vmatprep.subr.mxu0 0.0
    %977 = vmatpush1.msra.mxu0 %v684
    %978 = vmatprep.subr.mxu0 0.0
    %979 = vmatpush1.msra.mxu0 %v690
    %980 = vmatprep.subr.mxu0 0.0
    %981 = vmatpush1.msra.mxu0 %v696
    %982 = vmatprep.subr.mxu0 0.0
    %983 = vmatpush1.msra.mxu0 %v702
    %984 = vmatprep.subr.mxu0 0.0
    %985 = vmatpush1.msra.mxu0 0.0
    %986 = vmatprep.subr.mxu0 0.0
    %987 = vmatpush1.msra.mxu0 0.0
    %988 = vmatprep.subr.mxu0 0.0
    %989 = vmatpush1.msra.mxu0 0.0
    %990 = vmatprep.subr.mxu0 0.0
    %991 = vmatpush1.msra.mxu0 0.0
    %992 = vmatprep.subr.mxu0 0.0
    %993 = vmatpush1.msra.mxu0 0.0
    %994 = vmatprep.subr.mxu0 0.0
    %995 = vmatpush1.msra.mxu0 0.0
    %996 = vmatprep.subr.mxu0 0.0
    %997 = vmatpush1.msra.mxu0 0.0
    %998 = vmatprep.subr.mxu0 0.0
    %999 = vmatpush1.msra.mxu0 0.0
    %1000 = vmatprep.subr.mxu0 0.0
    %1001 = vmatpush1.msra.mxu0 0.0
    %1002 = vmatprep.subr.mxu0 0.0
    %1003 = vmatpush1.msra.mxu0 0.0
    %1004 = vmatprep.subr.mxu0 0.0
    %1005 = vmatpush1.msra.mxu0 0.0
    %1006 = vmatprep.subr.mxu0 0.0
    %1007 = vmatpush1.msra.mxu0 0.0
    %1008 = vmatprep.subr.mxu0 0.0
    %1009 = vmatpush1.msra.mxu0 0.0
    %1010 = vmatprep.subr.mxu0 0.0
    %1011 = vmatpush1.msra.mxu0 0.0
    %1012 = vmatprep.subr.mxu0 0.0
    %1013 = vmatpush1.msra.mxu0 0.0
    %1014 = vmatprep.subr.mxu0 0.0
    %1015 = vmatpush1.msra.mxu0 0.0
    %1016 = vmatprep.subr.mxu0 0.0
    %1017 = vmatpush1.msra.mxu0 0.0
    %1018 = vmatprep.subr.mxu0 0.0
    %1019 = vmatpush1.msra.mxu0 0.0
    %1020 = vmatprep.subr.mxu0 0.0
    %1021 = vmatpush1.msra.mxu0 0.0
    %1022 = vmatprep.subr.mxu0 0.0
    %1023 = vmatpush1.msra.mxu0 0.0
    %1024 = vmatprep.subr.mxu0 0.0
    %1025 = vmatpush1.msra.mxu0 0.0
    %1026 = vmatprep.subr.mxu0 0.0
    %1027 = vmatpush1.msra.mxu0 0.0
    %1028 = vmatprep.subr.mxu0 0.0
    %1029 = vmatpush1.msra.mxu0 0.0
    %1030 = vmatprep.subr.mxu0 0.0
    %1031 = vmatpush1.msra.mxu0 0.0
    %1032 = vmatprep.subr.mxu0 0.0
    %1033 = vmatpush1.msra.mxu0 0.0
    %1034 = vmatprep.subr.mxu0 0.0
    %1035 = vmatpush1.msra.mxu0 0.0
    %1036 = vmatprep.subr.mxu0 0.0
    %1037 = vmatpush1.msra.mxu0 0.0
    %1038 = vmatprep.subr.mxu0 0.0
    %1039 = vmatpush1.msra.mxu0 0.0
    %1040 = vmatprep.mubr.f32.mxu0 0.0
    %1041 = vmatmul.mubr.f32.gmra.mrb[0].mxu0 %v974
    %v1042 = vpop.f32.mrb[0].mxu0
    %v1043 = vadd.f32 0.0, %v1042
    %v1044 = vpop.f32.mrb[0].mxu0
    %1045 = vdwg.mxu0
    %1046 = vrot.lane.b32.xlu0 %v476, 64
    %v1047 = vpop.permute.xlu0 %1046
    %1048 = vrot.lane.b32.xlu0 %v547, 64
    %v1049 = vpop.permute.xlu0 %1048
    %1050 = vrot.lane.b32.xlu0 %v553, 64
    %v1051 = vpop.permute.xlu0 %1050
    %1052 = vrot.lane.b32.xlu0 %v559, 64
    %v1053 = vpop.permute.xlu0 %1052
    %1054 = vrot.lane.b32.xlu0 %v565, 64
    %v1055 = vpop.permute.xlu0 %1054
    %v1056 = vsel %vm706, %v1047, 0
    %v1058 = vsel %vm706, %v1049, 0
    %v1060 = vsel %vm706, %v1051, 0
    %v1062 = vsel %vm706, %v1053, 0
    %v1064 = vsel %vm706, %v1055, 0
    %1066 = vmatprep.subr.mxu0 0.0
    %1067 = vmatpush1.xpose.msra.mxu0 %v1058
    %1068 = vmatprep.subr.mxu0 0.0
    %1069 = vmatpush1.xpose.msra.mxu0 %v1060
    %1070 = vmatprep.subr.mxu0 0.0
    %1071 = vmatpush1.xpose.msra.mxu0 %v1062
    %1072 = vmatprep.subr.mxu0 0.0
    %1073 = vmatpush1.xpose.msra.mxu0 %v1064
    %1074 = vmatprep.subr.mxu0 0.0
    %1075 = vmatpush1.xpose.msra.mxu0 0.0
    %1076 = vmatprep.subr.mxu0 0.0
    %1077 = vmatpush1.xpose.msra.mxu0 0.0
    %1078 = vmatprep.subr.mxu0 0.0
    %1079 = vmatpush1.xpose.msra.mxu0 0.0
    %1080 = vmatprep.subr.mxu0 0.0
    %1081 = vmatpush1.xpose.msra.mxu0 0.0
    %1082 = vmatprep.subr.mxu0 0.0
    %1083 = vmatpush1.xpose.msra.mxu0 0.0
    %1084 = vmatprep.subr.mxu0 0.0
    %1085 = vmatpush1.xpose.msra.mxu0 0.0
    %1086 = vmatprep.subr.mxu0 0.0
    %1087 = vmatpush1.xpose.msra.mxu0 0.0
    %1088 = vmatprep.subr.mxu0 0.0
    %1089 = vmatpush1.xpose.msra.mxu0 0.0
    %1090 = vmatprep.subr.mxu0 0.0
    %1091 = vmatpush1.xpose.msra.mxu0 0.0
    %1092 = vmatprep.subr.mxu0 0.0
    %1093 = vmatpush1.xpose.msra.mxu0 0.0
    %1094 = vmatprep.subr.mxu0 0.0
    %1095 = vmatpush1.xpose.msra.mxu0 0.0
    %1096 = vmatprep.subr.mxu0 0.0
    %1097 = vmatpush1.xpose.msra.mxu0 0.0
    %1098 = vmatprep.subr.mxu0 0.0
    %1099 = vmatpush1.xpose.msra.mxu0 0.0
    %1100 = vmatprep.subr.mxu0 0.0
    %1101 = vmatpush1.xpose.msra.mxu0 0.0
    %1102 = vmatprep.subr.mxu0 0.0
    %1103 = vmatpush1.xpose.msra.mxu0 0.0
    %1104 = vmatprep.subr.mxu0 0.0
    %1105 = vmatpush1.xpose.msra.mxu0 0.0
    %1106 = vmatprep.subr.mxu0 0.0
    %1107 = vmatpush1.xpose.msra.mxu0 0.0
    %1108 = vmatprep.subr.mxu0 0.0
    %1109 = vmatpush1.xpose.msra.mxu0 0.0
    %1110 = vmatprep.subr.mxu0 0.0
    %1111 = vmatpush1.xpose.msra.mxu0 0.0
    %1112 = vmatprep.subr.mxu0 0.0
    %1113 = vmatpush1.xpose.msra.mxu0 0.0
    %1114 = vmatprep.subr.mxu0 0.0
    %1115 = vmatpush1.xpose.msra.mxu0 0.0
    %1116 = vmatprep.subr.mxu0 0.0
    %1117 = vmatpush1.xpose.msra.mxu0 0.0
    %1118 = vmatprep.subr.mxu0 0.0
    %1119 = vmatpush1.xpose.msra.mxu0 0.0
    %1120 = vmatprep.subr.mxu0 0.0
    %1121 = vmatpush1.xpose.msra.mxu0 0.0
    %1122 = vmatprep.subr.mxu0 0.0
    %1123 = vmatpush1.xpose.msra.mxu0 0.0
    %1124 = vmatprep.subr.mxu0 0.0
    %1125 = vmatpush1.xpose.msra.mxu0 0.0
    %1126 = vmatprep.subr.mxu0 0.0
    %1127 = vmatpush1.xpose.msra.mxu0 0.0
    %1128 = vmatprep.subr.mxu0 0.0
    %1129 = vmatpush1.xpose.msra.mxu0 0.0
    %1130 = vmatprep.mubr.f32.mxu0 0.0
    %1131 = vmatmul.mubr.f32.gmra.mrb[0].mxu0 %v1056
    %v1132 = vpop.f32.mrb[0].mxu0
    %v1133 = vadd.f32 0.0, %v1132
    %v1134 = vpop.f32.mrb[0].mxu0
    %1135 = vdwg.mxu0
    %1136 = vrot.lane.b32.xlu0 %v478, 64
    %v1137 = vpop.permute.xlu0 %1136
    %1138 = vrot.lane.b32.xlu0 %v571, 64
    %v1139 = vpop.permute.xlu0 %1138
    %1140 = vrot.lane.b32.xlu0 %v577, 64
    %v1141 = vpop.permute.xlu0 %1140
    %1142 = vrot.lane.b32.xlu0 %v583, 64
    %v1143 = vpop.permute.xlu0 %1142
    %1144 = vrot.lane.b32.xlu0 %v589, 64
    %v1145 = vpop.permute.xlu0 %1144
    %v1146 = vsel %vm706, %v1137, 0
    %v1148 = vsel %vm706, %v1139, 0
    %v1150 = vsel %vm706, %v1141, 0
    %v1152 = vsel %vm706, %v1143, 0
    %v1154 = vsel %vm706, %v1145, 0
    %1156 = vmatprep.subr.mxu0 0.0
    %1157 = vmatpush1.xpose.msra.mxu0 %v1148
    %1158 = vmatprep.subr.mxu0 0.0
    %1159 = vmatpush1.xpose.msra.mxu0 %v1150
    %1160 = vmatprep.subr.mxu0 0.0
    %1161 = vmatpush1.xpose.msra.mxu0 %v1152
    %1162 = vmatprep.subr.mxu0 0.0
    %1163 = vmatpush1.xpose.msra.mxu0 %v1154
    %1164 = vmatprep.subr.mxu0 0.0
    %1165 = vmatpush1.xpose.msra.mxu0 0.0
    %1166 = vmatprep.subr.mxu0 0.0
    %1167 = vmatpush1.xpose.msra.mxu0 0.0
    %1168 = vmatprep.subr.mxu0 0.0
    %1169 = vmatpush1.xpose.msra.mxu0 0.0
    %1170 = vmatprep.subr.mxu0 0.0
    %1171 = vmatpush1.xpose.msra.mxu0 0.0
    %1172 = vmatprep.subr.mxu0 0.0
    %1173 = vmatpush1.xpose.msra.mxu0 0.0
    %1174 = vmatprep.subr.mxu0 0.0
    %1175 = vmatpush1.xpose.msra.mxu0 0.0
    %1176 = vmatprep.subr.mxu0 0.0
    %1177 = vmatpush1.xpose.msra.mxu0 0.0
    %1178 = vmatprep.subr.mxu0 0.0
    %1179 = vmatpush1.xpose.msra.mxu0 0.0
    %1180 = vmatprep.subr.mxu0 0.0
    %1181 = vmatpush1.xpose.msra.mxu0 0.0
    %1182 = vmatprep.subr.mxu0 0.0
    %1183 = vmatpush1.xpose.msra.mxu0 0.0
    %1184 = vmatprep.subr.mxu0 0.0
    %1185 = vmatpush1.xpose.msra.mxu0 0.0
    %1186 = vmatprep.subr.mxu0 0.0
    %1187 = vmatpush1.xpose.msra.mxu0 0.0
    %1188 = vmatprep.subr.mxu0 0.0
    %1189 = vmatpush1.xpose.msra.mxu0 0.0
    %1190 = vmatprep.subr.mxu0 0.0
    %1191 = vmatpush1.xpose.msra.mxu0 0.0
    %1192 = vmatprep.subr.mxu0 0.0
    %1193 = vmatpush1.xpose.msra.mxu0 0.0
    %1194 = vmatprep.subr.mxu0 0.0
    %1195 = vmatpush1.xpose.msra.mxu0 0.0
    %1196 = vmatprep.subr.mxu0 0.0
    %1197 = vmatpush1.xpose.msra.mxu0 0.0
    %1198 = vmatprep.subr.mxu0 0.0
    %1199 = vmatpush1.xpose.msra.mxu0 0.0
    %1200 = vmatprep.subr.mxu0 0.0
    %1201 = vmatpush1.xpose.msra.mxu0 0.0
    %1202 = vmatprep.subr.mxu0 0.0
    %1203 = vmatpush1.xpose.msra.mxu0 0.0
    %1204 = vmatprep.subr.mxu0 0.0
    %1205 = vmatpush1.xpose.msra.mxu0 0.0
    %1206 = vmatprep.subr.mxu0 0.0
    %1207 = vmatpush1.xpose.msra.mxu0 0.0
    %1208 = vmatprep.subr.mxu0 0.0
    %1209 = vmatpush1.xpose.msra.mxu0 0.0
    %1210 = vmatprep.subr.mxu0 0.0
    %1211 = vmatpush1.xpose.msra.mxu0 0.0
    %1212 = vmatprep.subr.mxu0 0.0
    %1213 = vmatpush1.xpose.msra.mxu0 0.0
    %1214 = vmatprep.subr.mxu0 0.0
    %1215 = vmatpush1.xpose.msra.mxu0 0.0
    %1216 = vmatprep.subr.mxu0 0.0
    %1217 = vmatpush1.xpose.msra.mxu0 0.0
    %1218 = vmatprep.subr.mxu0 0.0
    %1219 = vmatpush1.xpose.msra.mxu0 0.0
    %1220 = vmatprep.mubr.f32.mxu0 0.0
    %1221 = vmatmul.mubr.f32.gmra.mrb[0].mxu0 %v1146
    %v1222 = vpop.f32.mrb[0].mxu0
    %v1223 = vadd.f32 0.0, %v1222
    %v1224 = vpop.f32.mrb[0].mxu0
    %1225 = vdwg.mxu0
    %v1226 = vsel %vm877, %v1133, -inf
    %1227 = vmax.xlane.f32.xlu0 %v1226
    %v1228 = vpop.xlane.xlu0 %1227
    %v1229 = vsel %vm877, %v1223, -inf
    %1230 = vmax.xlane.f32.xlu0 %v1229
    %v1231 = vpop.xlane.xlu0 %1230
    %v1232 = vsub.f32 %v1133, %v1228
    %v1233 = vsub.f32 %v1223, %v1231
    %v1234 = vmul.f32 %v1232, 1.442695
    %v1235 = vpow.pop %v1234
    %v1236 = vmul.f32 %v1233, 1.442695
    %v1237 = vpow.pop %v1236
    %v1238 = vsel %vm877, %v1235, 0.0
    %1239 = vadd.xlane.f32.xlu0 %v1238
    %v1240 = vpop.xlane.xlu0 %1239
    %v1241 = vsel %vm877, %v1237, 0.0
    %1242 = vadd.xlane.f32.xlu0 %v1241
    %v1243 = vpop.xlane.xlu0 %1242
    %v1244 = vrcp.pop %v1240
    %v1245 = vmul.f32 %v1235, %v1244
    %v1246 = vrcp.pop %v1243
    %v1247 = vmul.f32 %v1237, %v1246
    %1252 = vrot.lane.b32.xlu0 %v660, 64
    %v1253 = vpop.permute.xlu0 %1252
    %1254 = vrot.lane.b32.xlu0 %v666, 64
    %v1255 = vpop.permute.xlu0 %1254
    %1256 = vrot.lane.b32.xlu0 %v672, 64
    %v1257 = vpop.permute.xlu0 %1256
    %1258 = vrot.lane.b32.xlu0 %v678, 64
    %v1259 = vpop.permute.xlu0 %1258
    %v1265 = vsel %vm877, %v1245, 0
    %1267 = vmatprep.subr.mxu0 0.0
    %1268 = vmatpush1.msra.mxu0 %v1253
    %1269 = vmatprep.subr.mxu0 0.0
    %1270 = vmatpush1.msra.mxu0 %v1255
    %1271 = vmatprep.subr.mxu0 0.0
    %1272 = vmatpush1.msra.mxu0 %v1257
    %1273 = vmatprep.subr.mxu0 0.0
    %1274 = vmatpush1.msra.mxu0 %v1259
    %1275 = vmatprep.subr.mxu0 0.0
    %1276 = vmatpush1.msra.mxu0 0.0
    %1277 = vmatprep.subr.mxu0 0.0
    %1278 = vmatpush1.msra.mxu0 0.0
    %1279 = vmatprep.subr.mxu0 0.0
    %1280 = vmatpush1.msra.mxu0 0.0
    %1281 = vmatprep.subr.mxu0 0.0
    %1282 = vmatpush1.msra.mxu0 0.0
    %1283 = vmatprep.subr.mxu0 0.0
    %1284 = vmatpush1.msra.mxu0 0.0
    %1285 = vmatprep.subr.mxu0 0.0
    %1286 = vmatpush1.msra.mxu0 0.0
    %1287 = vmatprep.subr.mxu0 0.0
    %1288 = vmatpush1.msra.mxu0 0.0
    %1289 = vmatprep.subr.mxu0 0.0
    %1290 = vmatpush1.msra.mxu0 0.0
    %1291 = vmatprep.subr.mxu0 0.0
    %1292 = vmatpush1.msra.mxu0 0.0
    %1293 = vmatprep.subr.mxu0 0.0
    %1294 = vmatpush1.msra.mxu0 0.0
    %1295 = vmatprep.subr.mxu0 0.0
    %1296 = vmatpush1.msra.mxu0 0.0
    %1297 = vmatprep.subr.mxu0 0.0
    %1298 = vmatpush1.msra.mxu0 0.0
    %1299 = vmatprep.subr.mxu0 0.0
    %1300 = vmatpush1.msra.mxu0 0.0
    %1301 = vmatprep.subr.mxu0 0.0
    %1302 = vmatpush1.msra.mxu0 0.0
    %1303 = vmatprep.subr.mxu0 0.0
    %1304 = vmatpush1.msra.mxu0 0.0
    %1305 = vmatprep.subr.mxu0 0.0
    %1306 = vmatpush1.msra.mxu0 0.0
    %1307 = vmatprep.subr.mxu0 0.0
    %1308 = vmatpush1.msra.mxu0 0.0
    %1309 = vmatprep.subr.mxu0 0.0
    %1310 = vmatpush1.msra.mxu0 0.0
    %1311 = vmatprep.subr.mxu0 0.0
    %1312 = vmatpush1.msra.mxu0 0.0
    %1313 = vmatprep.subr.mxu0 0.0
    %1314 = vmatpush1.msra.mxu0 0.0
    %1315 = vmatprep.subr.mxu0 0.0
    %1316 = vmatpush1.msra.mxu0 0.0
    %1317 = vmatprep.subr.mxu0 0.0
    %1318 = vmatpush1.msra.mxu0 0.0
    %1319 = vmatprep.subr.mxu0 0.0
    %1320 = vmatpush1.msra.mxu0 0.0
    %1321 = vmatprep.subr.mxu0 0.0
    %1322 = vmatpush1.msra.mxu0 0.0
    %1323 = vmatprep.subr.mxu0 0.0
    %1324 = vmatpush1.msra.mxu0 0.0
    %1325 = vmatprep.subr.mxu0 0.0
    %1326 = vmatpush1.msra.mxu0 0.0
    %1327 = vmatprep.subr.mxu0 0.0
    %1328 = vmatpush1.msra.mxu0 0.0
    %1329 = vmatprep.subr.mxu0 0.0
    %1330 = vmatpush1.msra.mxu0 0.0
    %1331 = vmatprep.mubr.f32.mxu0 0.0
    %1332 = vmatmul.mubr.f32.gmra.mrb[0].mxu0 %v1265
    %v1333 = vpop.f32.mrb[0].mxu0
    %v1334 = vadd.f32 0.0, %v1333
    %v1335 = vpop.f32.mrb[0].mxu0
    %1336 = vdwg.mxu0
    %1341 = vrot.lane.b32.xlu0 %v684, 64
    %v1342 = vpop.permute.xlu0 %1341
    %1343 = vrot.lane.b32.xlu0 %v690, 64
    %v1344 = vpop.permute.xlu0 %1343
    %1345 = vrot.lane.b32.xlu0 %v696, 64
    %v1346 = vpop.permute.xlu0 %1345
    %1347 = vrot.lane.b32.xlu0 %v702, 64
    %v1348 = vpop.permute.xlu0 %1347
    %v1354 = vsel %vm877, %v1247, 0
    %1356 = vmatprep.subr.mxu0 0.0
    %1357 = vmatpush1.msra.mxu0 %v1342
    %1358 = vmatprep.subr.mxu0 0.0
    %1359 = vmatpush1.msra.mxu0 %v1344
    %1360 = vmatprep.subr.mxu0 0.0
    %1361 = vmatpush1.msra.mxu0 %v1346
    %1362 = vmatprep.subr.mxu0 0.0
    %1363 = vmatpush1.msra.mxu0 %v1348
    %1364 = vmatprep.subr.mxu0 0.0
    %1365 = vmatpush1.msra.mxu0 0.0
    %1366 = vmatprep.subr.mxu0 0.0
    %1367 = vmatpush1.msra.mxu0 0.0
    %1368 = vmatprep.subr.mxu0 0.0
    %1369 = vmatpush1.msra.mxu0 0.0
    %1370 = vmatprep.subr.mxu0 0.0
    %1371 = vmatpush1.msra.mxu0 0.0
    %1372 = vmatprep.subr.mxu0 0.0
    %1373 = vmatpush1.msra.mxu0 0.0
    %1374 = vmatprep.subr.mxu0 0.0
    %1375 = vmatpush1.msra.mxu0 0.0
    %1376 = vmatprep.subr.mxu0 0.0
    %1377 = vmatpush1.msra.mxu0 0.0
    %1378 = vmatprep.subr.mxu0 0.0
    %1379 = vmatpush1.msra.mxu0 0.0
    %1380 = vmatprep.subr.mxu0 0.0
    %1381 = vmatpush1.msra.mxu0 0.0
    %1382 = vmatprep.subr.mxu0 0.0
    %1383 = vmatpush1.msra.mxu0 0.0
    %1384 = vmatprep.subr.mxu0 0.0
    %1385 = vmatpush1.msra.mxu0 0.0
    %1386 = vmatprep.subr.mxu0 0.0
    %1387 = vmatpush1.msra.mxu0 0.0
    %1388 = vmatprep.subr.mxu0 0.0
    %1389 = vmatpush1.msra.mxu0 0.0
    %1390 = vmatprep.subr.mxu0 0.0
    %1391 = vmatpush1.msra.mxu0 0.0
    %1392 = vmatprep.subr.mxu0 0.0
    %1393 = vmatpush1.msra.mxu0 0.0
    %1394 = vmatprep.subr.mxu0 0.0
    %1395 = vmatpush1.msra.mxu0 0.0
    %1396 = vmatprep.subr.mxu0 0.0
    %1397 = vmatpush1.msra.mxu0 0.0
    %1398 = vmatprep.subr.mxu0 0.0
    %1399 = vmatpush1.msra.mxu0 0.0
    %1400 = vmatprep.subr.mxu0 0.0
    %1401 = vmatpush1.msra.mxu0 0.0
    %1402 = vmatprep.subr.mxu0 0.0
    %1403 = vmatpush1.msra.mxu0 0.0
    %1404 = vmatprep.subr.mxu0 0.0
    %1405 = vmatpush1.msra.mxu0 0.0
    %1406 = vmatprep.subr.mxu0 0.0
    %1407 = vmatpush1.msra.mxu0 0.0
    %1408 = vmatprep.subr.mxu0 0.0
    %1409 = vmatpush1.msra.mxu0 0.0
    %1410 = vmatprep.subr.mxu0 0.0
    %1411 = vmatpush1.msra.mxu0 0.0
    %1412 = vmatprep.subr.mxu0 0.0
    %1413 = vmatpush1.msra.mxu0 0.0
    %1414 = vmatprep.subr.mxu0 0.0
    %1415 = vmatpush1.msra.mxu0 0.0
    %1416 = vmatprep.subr.mxu0 0.0
    %1417 = vmatpush1.msra.mxu0 0.0
    %1418 = vmatprep.subr.mxu0 0.0
    %1419 = vmatpush1.msra.mxu0 0.0
    %1420 = vmatprep.mubr.f32.mxu0 0.0
    %1421 = vmatmul.mubr.f32.gmra.mrb[0].mxu0 %v1354
    %v1422 = vpop.f32.mrb[0].mxu0
    %v1423 = vadd.f32 0.0, %v1422
    %v1424 = vpop.f32.mrb[0].mxu0
    %1425 = vdwg.mxu0
    %v1427 = vsel %vm706, %v477, 0
    %v1430 = vsel %vm706, %v549, 0
    %v1433 = vsel %vm706, %v555, 0
    %v1436 = vsel %vm706, %v561, 0
    %v1439 = vsel %vm706, %v567, 0
    %1441 = vmatprep.subr.mxu0 0.0
    %1442 = vmatpush1.xpose.msra.mxu0 %v1430
    %1443 = vmatprep.subr.mxu0 0.0
    %1444 = vmatpush1.xpose.msra.mxu0 %v1433
    %1445 = vmatprep.subr.mxu0 0.0
    %1446 = vmatpush1.xpose.msra.mxu0 %v1436
    %1447 = vmatprep.subr.mxu0 0.0
    %1448 = vmatpush1.xpose.msra.mxu0 %v1439
    %1449 = vmatprep.subr.mxu0 0.0
    %1450 = vmatpush1.xpose.msra.mxu0 0.0
    %1451 = vmatprep.subr.mxu0 0.0
    %1452 = vmatpush1.xpose.msra.mxu0 0.0
    %1453 = vmatprep.subr.mxu0 0.0
    %1454 = vmatpush1.xpose.msra.mxu0 0.0
    %1455 = vmatprep.subr.mxu0 0.0
    %1456 = vmatpush1.xpose.msra.mxu0 0.0
    %1457 = vmatprep.subr.mxu0 0.0
    %1458 = vmatpush1.xpose.msra.mxu0 0.0
    %1459 = vmatprep.subr.mxu0 0.0
    %1460 = vmatpush1.xpose.msra.mxu0 0.0
    %1461 = vmatprep.subr.mxu0 0.0
    %1462 = vmatpush1.xpose.msra.mxu0 0.0
    %1463 = vmatprep.subr.mxu0 0.0
    %1464 = vmatpush1.xpose.msra.mxu0 0.0
    %1465 = vmatprep.subr.mxu0 0.0
    %1466 = vmatpush1.xpose.msra.mxu0 0.0
    %1467 = vmatprep.subr.mxu0 0.0
    %1468 = vmatpush1.xpose.msra.mxu0 0.0
    %1469 = vmatprep.subr.mxu0 0.0
    %1470 = vmatpush1.xpose.msra.mxu0 0.0
    %1471 = vmatprep.subr.mxu0 0.0
    %1472 = vmatpush1.xpose.msra.mxu0 0.0
    %1473 = vmatprep.subr.mxu0 0.0
    %1474 = vmatpush1.xpose.msra.mxu0 0.0
    %1475 = vmatprep.subr.mxu0 0.0
    %1476 = vmatpush1.xpose.msra.mxu0 0.0
    %1477 = vmatprep.subr.mxu0 0.0
    %1478 = vmatpush1.xpose.msra.mxu0 0.0
    %1479 = vmatprep.subr.mxu0 0.0
    %1480 = vmatpush1.xpose.msra.mxu0 0.0
    %1481 = vmatprep.subr.mxu0 0.0
    %1482 = vmatpush1.xpose.msra.mxu0 0.0
    %1483 = vmatprep.subr.mxu0 0.0
    %1484 = vmatpush1.xpose.msra.mxu0 0.0
    %1485 = vmatprep.subr.mxu0 0.0
    %1486 = vmatpush1.xpose.msra.mxu0 0.0
    %1487 = vmatprep.subr.mxu0 0.0
    %1488 = vmatpush1.xpose.msra.mxu0 0.0
    %1489 = vmatprep.subr.mxu0 0.0
    %1490 = vmatpush1.xpose.msra.mxu0 0.0
    %1491 = vmatprep.subr.mxu0 0.0
    %1492 = vmatpush1.xpose.msra.mxu0 0.0
    %1493 = vmatprep.subr.mxu0 0.0
    %1494 = vmatpush1.xpose.msra.mxu0 0.0
    %1495 = vmatprep.subr.mxu0 0.0
    %1496 = vmatpush1.xpose.msra.mxu0 0.0
    %1497 = vmatprep.subr.mxu0 0.0
    %1498 = vmatpush1.xpose.msra.mxu0 0.0
    %1499 = vmatprep.subr.mxu0 0.0
    %1500 = vmatpush1.xpose.msra.mxu0 0.0
    %1501 = vmatprep.subr.mxu0 0.0
    %1502 = vmatpush1.xpose.msra.mxu0 0.0
    %1503 = vmatprep.subr.mxu0 0.0
    %1504 = vmatpush1.xpose.msra.mxu0 0.0
    %1505 = vmatprep.mubr.f32.mxu0 0.0
    %1506 = vmatmul.mubr.f32.gmra.mrb[0].mxu0 %v1427
    %v1507 = vpop.f32.mrb[0].mxu0
    %v1508 = vadd.f32 0.0, %v1507
    %v1509 = vpop.f32.mrb[0].mxu0
    %1510 = vdwg.mxu0
    %v1512 = vsel %vm706, %v479, 0
    %v1515 = vsel %vm706, %v573, 0
    %v1518 = vsel %vm706, %v579, 0
    %v1521 = vsel %vm706, %v585, 0
    %v1524 = vsel %vm706, %v591, 0
    %1526 = vmatprep.subr.mxu0 0.0
    %1527 = vmatpush1.xpose.msra.mxu0 %v1515
    %1528 = vmatprep.subr.mxu0 0.0
    %1529 = vmatpush1.xpose.msra.mxu0 %v1518
    %1530 = vmatprep.subr.mxu0 0.0
    %1531 = vmatpush1.xpose.msra.mxu0 %v1521
    %1532 = vmatprep.subr.mxu0 0.0
    %1533 = vmatpush1.xpose.msra.mxu0 %v1524
    %1534 = vmatprep.subr.mxu0 0.0
    %1535 = vmatpush1.xpose.msra.mxu0 0.0
    %1536 = vmatprep.subr.mxu0 0.0
    %1537 = vmatpush1.xpose.msra.mxu0 0.0
    %1538 = vmatprep.subr.mxu0 0.0
    %1539 = vmatpush1.xpose.msra.mxu0 0.0
    %1540 = vmatprep.subr.mxu0 0.0
    %1541 = vmatpush1.xpose.msra.mxu0 0.0
    %1542 = vmatprep.subr.mxu0 0.0
    %1543 = vmatpush1.xpose.msra.mxu0 0.0
    %1544 = vmatprep.subr.mxu0 0.0
    %1545 = vmatpush1.xpose.msra.mxu0 0.0
    %1546 = vmatprep.subr.mxu0 0.0
    %1547 = vmatpush1.xpose.msra.mxu0 0.0
    %1548 = vmatprep.subr.mxu0 0.0
    %1549 = vmatpush1.xpose.msra.mxu0 0.0
    %1550 = vmatprep.subr.mxu0 0.0
    %1551 = vmatpush1.xpose.msra.mxu0 0.0
    %1552 = vmatprep.subr.mxu0 0.0
    %1553 = vmatpush1.xpose.msra.mxu0 0.0
    %1554 = vmatprep.subr.mxu0 0.0
    %1555 = vmatpush1.xpose.msra.mxu0 0.0
    %1556 = vmatprep.subr.mxu0 0.0
    %1557 = vmatpush1.xpose.msra.mxu0 0.0
    %1558 = vmatprep.subr.mxu0 0.0
    %1559 = vmatpush1.xpose.msra.mxu0 0.0
    %1560 = vmatprep.subr.mxu0 0.0
    %1561 = vmatpush1.xpose.msra.mxu0 0.0
    %1562 = vmatprep.subr.mxu0 0.0
    %1563 = vmatpush1.xpose.msra.mxu0 0.0
    %1564 = vmatprep.subr.mxu0 0.0
    %1565 = vmatpush1.xpose.msra.mxu0 0.0
    %1566 = vmatprep.subr.mxu0 0.0
    %1567 = vmatpush1.xpose.msra.mxu0 0.0
    %1568 = vmatprep.subr.mxu0 0.0
    %1569 = vmatpush1.xpose.msra.mxu0 0.0
    %1570 = vmatprep.subr.mxu0 0.0
    %1571 = vmatpush1.xpose.msra.mxu0 0.0
    %1572 = vmatprep.subr.mxu0 0.0
    %1573 = vmatpush1.xpose.msra.mxu0 0.0
    %1574 = vmatprep.subr.mxu0 0.0
    %1575 = vmatpush1.xpose.msra.mxu0 0.0
    %1576 = vmatprep.subr.mxu0 0.0
    %1577 = vmatpush1.xpose.msra.mxu0 0.0
    %1578 = vmatprep.subr.mxu0 0.0
    %1579 = vmatpush1.xpose.msra.mxu0 0.0
    %1580 = vmatprep.subr.mxu0 0.0
    %1581 = vmatpush1.xpose.msra.mxu0 0.0
    %1582 = vmatprep.subr.mxu0 0.0
    %1583 = vmatpush1.xpose.msra.mxu0 0.0
    %1584 = vmatprep.subr.mxu0 0.0
    %1585 = vmatpush1.xpose.msra.mxu0 0.0
    %1586 = vmatprep.subr.mxu0 0.0
    %1587 = vmatpush1.xpose.msra.mxu0 0.0
    %1588 = vmatprep.subr.mxu0 0.0
    %1589 = vmatpush1.xpose.msra.mxu0 0.0
    %1590 = vmatprep.mubr.f32.mxu0 0.0
    %1591 = vmatmul.mubr.f32.gmra.mrb[0].mxu0 %v1512
    %v1592 = vpop.f32.mrb[0].mxu0
    %v1593 = vadd.f32 0.0, %v1592
    %v1594 = vpop.f32.mrb[0].mxu0
    %1595 = vdwg.mxu0
    %v1596 = vsel %vm877, %v1508, -inf
    %1597 = vmax.xlane.f32.xlu0 %v1596
    %v1598 = vpop.xlane.xlu0 %1597
    %v1599 = vsel %vm877, %v1593, -inf
    %1600 = vmax.xlane.f32.xlu0 %v1599
    %v1601 = vpop.xlane.xlu0 %1600
    %v1602 = vsub.f32 %v1508, %v1598
    %v1603 = vsub.f32 %v1593, %v1601
    %v1604 = vmul.f32 %v1602, 1.442695
    %v1605 = vpow.pop %v1604
    %v1606 = vmul.f32 %v1603, 1.442695
    %v1607 = vpow.pop %v1606
    %v1608 = vsel %vm877, %v1605, 0.0
    %1609 = vadd.xlane.f32.xlu0 %v1608
    %v1610 = vpop.xlane.xlu0 %1609
    %v1611 = vsel %vm877, %v1607, 0.0
    %1612 = vadd.xlane.f32.xlu0 %v1611
    %v1613 = vpop.xlane.xlu0 %1612
    %v1614 = vrcp.pop %v1610
    %v1615 = vmul.f32 %v1605, %v1614
    %v1616 = vrcp.pop %v1613
    %v1617 = vmul.f32 %v1607, %v1616
    %v1619 = vsel %vm877, %v1615, 0
    %1621 = vmatprep.subr.mxu0 0.0
    %1622 = vmatpush1.msra.mxu0 %v662
    %1623 = vmatprep.subr.mxu0 0.0
    %1624 = vmatpush1.msra.mxu0 %v668
    %1625 = vmatprep.subr.mxu0 0.0
    %1626 = vmatpush1.msra.mxu0 %v674
    %1627 = vmatprep.subr.mxu0 0.0
    %1628 = vmatpush1.msra.mxu0 %v680
    %1629 = vmatprep.subr.mxu0 0.0
    %1630 = vmatpush1.msra.mxu0 0.0
    %1631 = vmatprep.subr.mxu0 0.0
    %1632 = vmatpush1.msra.mxu0 0.0
    %1633 = vmatprep.subr.mxu0 0.0
    %1634 = vmatpush1.msra.mxu0 0.0
    %1635 = vmatprep.subr.mxu0 0.0
    %1636 = vmatpush1.msra.mxu0 0.0
    %1637 = vmatprep.subr.mxu0 0.0
    %1638 = vmatpush1.msra.mxu0 0.0
    %1639 = vmatprep.subr.mxu0 0.0
    %1640 = vmatpush1.msra.mxu0 0.0
    %1641 = vmatprep.subr.mxu0 0.0
    %1642 = vmatpush1.msra.mxu0 0.0
    %1643 = vmatprep.subr.mxu0 0.0
    %1644 = vmatpush1.msra.mxu0 0.0
    %1645 = vmatprep.subr.mxu0 0.0
    %1646 = vmatpush1.msra.mxu0 0.0
    %1647 = vmatprep.subr.mxu0 0.0
    %1648 = vmatpush1.msra.mxu0 0.0
    %1649 = vmatprep.subr.mxu0 0.0
    %1650 = vmatpush1.msra.mxu0 0.0
    %1651 = vmatprep.subr.mxu0 0.0
    %1652 = vmatpush1.msra.mxu0 0.0
    %1653 = vmatprep.subr.mxu0 0.0
    %1654 = vmatpush1.msra.mxu0 0.0
    %1655 = vmatprep.subr.mxu0 0.0
    %1656 = vmatpush1.msra.mxu0 0.0
    %1657 = vmatprep.subr.mxu0 0.0
    %1658 = vmatpush1.msra.mxu0 0.0
    %1659 = vmatprep.subr.mxu0 0.0
    %1660 = vmatpush1.msra.mxu0 0.0
    %1661 = vmatprep.subr.mxu0 0.0
    %1662 = vmatpush1.msra.mxu0 0.0
    %1663 = vmatprep.subr.mxu0 0.0
    %1664 = vmatpush1.msra.mxu0 0.0
    %1665 = vmatprep.subr.mxu0 0.0
    %1666 = vmatpush1.msra.mxu0 0.0
    %1667 = vmatprep.subr.mxu0 0.0
    %1668 = vmatpush1.msra.mxu0 0.0
    %1669 = vmatprep.subr.mxu0 0.0
    %1670 = vmatpush1.msra.mxu0 0.0
    %1671 = vmatprep.subr.mxu0 0.0
    %1672 = vmatpush1.msra.mxu0 0.0
    %1673 = vmatprep.subr.mxu0 0.0
    %1674 = vmatpush1.msra.mxu0 0.0
    %1675 = vmatprep.subr.mxu0 0.0
    %1676 = vmatpush1.msra.mxu0 0.0
    %1677 = vmatprep.subr.mxu0 0.0
    %1678 = vmatpush1.msra.mxu0 0.0
    %1679 = vmatprep.subr.mxu0 0.0
    %1680 = vmatpush1.msra.mxu0 0.0
    %1681 = vmatprep.subr.mxu0 0.0
    %1682 = vmatpush1.msra.mxu0 0.0
    %1683 = vmatprep.subr.mxu0 0.0
    %1684 = vmatpush1.msra.mxu0 0.0
    %1685 = vmatprep.mubr.f32.mxu0 0.0
    %1686 = vmatmul.mubr.f32.gmra.mrb[0].mxu0 %v1619
    %v1687 = vpop.f32.mrb[0].mxu0
    %v1688 = vadd.f32 0.0, %v1687
    %v1689 = vpop.f32.mrb[0].mxu0
    %1690 = vdwg.mxu0
    %v1692 = vsel %vm877, %v1617, 0
    %1694 = vmatprep.subr.mxu0 0.0
    %1695 = vmatpush1.msra.mxu0 %v686
    %1696 = vmatprep.subr.mxu0 0.0
    %1697 = vmatpush1.msra.mxu0 %v692
    %1698 = vmatprep.subr.mxu0 0.0
    %1699 = vmatpush1.msra.mxu0 %v698
    %1700 = vmatprep.subr.mxu0 0.0
    %1701 = vmatpush1.msra.mxu0 %v704
    %1702 = vmatprep.subr.mxu0 0.0
    %1703 = vmatpush1.msra.mxu0 0.0
    %1704 = vmatprep.subr.mxu0 0.0
    %1705 = vmatpush1.msra.mxu0 0.0
    %1706 = vmatprep.subr.mxu0 0.0
    %1707 = vmatpush1.msra.mxu0 0.0
    %1708 = vmatprep.subr.mxu0 0.0
    %1709 = vmatpush1.msra.mxu0 0.0
    %1710 = vmatprep.subr.mxu0 0.0
    %1711 = vmatpush1.msra.mxu0 0.0
    %1712 = vmatprep.subr.mxu0 0.0
    %1713 = vmatpush1.msra.mxu0 0.0
    %1714 = vmatprep.subr.mxu0 0.0
    %1715 = vmatpush1.msra.mxu0 0.0
    %1716 = vmatprep.subr.mxu0 0.0
    %1717 = vmatpush1.msra.mxu0 0.0
    %1718 = vmatprep.subr.mxu0 0.0
    %1719 = vmatpush1.msra.mxu0 0.0
    %1720 = vmatprep.subr.mxu0 0.0
    %1721 = vmatpush1.msra.mxu0 0.0
    %1722 = vmatprep.subr.mxu0 0.0
    %1723 = vmatpush1.msra.mxu0 0.0
    %1724 = vmatprep.subr.mxu0 0.0
    %1725 = vmatpush1.msra.mxu0 0.0
    %1726 = vmatprep.subr.mxu0 0.0
    %1727 = vmatpush1.msra.mxu0 0.0
    %1728 = vmatprep.subr.mxu0 0.0
    %1729 = vmatpush1.msra.mxu0 0.0
    %1730 = vmatprep.subr.mxu0 0.0
    %1731 = vmatpush1.msra.mxu0 0.0
    %1732 = vmatprep.subr.mxu0 0.0
    %1733 = vmatpush1.msra.mxu0 0.0
    %1734 = vmatprep.subr.mxu0 0.0
    %1735 = vmatpush1.msra.mxu0 0.0
    %1736 = vmatprep.subr.mxu0 0.0
    %1737 = vmatpush1.msra.mxu0 0.0
    %1738 = vmatprep.subr.mxu0 0.0
    %1739 = vmatpush1.msra.mxu0 0.0
    %1740 = vmatprep.subr.mxu0 0.0
    %1741 = vmatpush1.msra.mxu0 0.0
    %1742 = vmatprep.subr.mxu0 0.0
    %1743 = vmatpush1.msra.mxu0 0.0
    %1744 = vmatprep.subr.mxu0 0.0
    %1745 = vmatpush1.msra.mxu0 0.0
    %1746 = vmatprep.subr.mxu0 0.0
    %1747 = vmatpush1.msra.mxu0 0.0
    %1748 = vmatprep.subr.mxu0 0.0
    %1749 = vmatpush1.msra.mxu0 0.0
    %1750 = vmatprep.subr.mxu0 0.0
    %1751 = vmatpush1.msra.mxu0 0.0
    %1752 = vmatprep.subr.mxu0 0.0
    %1753 = vmatpush1.msra.mxu0 0.0
    %1754 = vmatprep.subr.mxu0 0.0
    %1755 = vmatpush1.msra.mxu0 0.0
    %1756 = vmatprep.subr.mxu0 0.0
    %1757 = vmatpush1.msra.mxu0 0.0
    %1758 = vmatprep.mubr.f32.mxu0 0.0
    %1759 = vmatmul.mubr.f32.gmra.mrb[0].mxu0 %v1692
    %v1760 = vpop.f32.mrb[0].mxu0
    %v1761 = vadd.f32 0.0, %v1760
    %v1762 = vpop.f32.mrb[0].mxu0
    %1763 = vdwg.mxu0
    %1764 = vrot.lane.b32.xlu0 %v477, 64
    %v1765 = vpop.permute.xlu0 %1764
    %1766 = vrot.lane.b32.xlu0 %v549, 64
    %v1767 = vpop.permute.xlu0 %1766
    %1768 = vrot.lane.b32.xlu0 %v555, 64
    %v1769 = vpop.permute.xlu0 %1768
    %1770 = vrot.lane.b32.xlu0 %v561, 64
    %v1771 = vpop.permute.xlu0 %1770
    %1772 = vrot.lane.b32.xlu0 %v567, 64
    %v1773 = vpop.permute.xlu0 %1772
    %v1774 = vsel %vm706, %v1765, 0
    %v1776 = vsel %vm706, %v1767, 0
    %v1778 = vsel %vm706, %v1769, 0
    %v1780 = vsel %vm706, %v1771, 0
    %v1782 = vsel %vm706, %v1773, 0
    %1784 = vmatprep.subr.mxu0 0.0
    %1785 = vmatpush1.xpose.msra.mxu0 %v1776
    %1786 = vmatprep.subr.mxu0 0.0
    %1787 = vmatpush1.xpose.msra.mxu0 %v1778
    %1788 = vmatprep.subr.mxu0 0.0
    %1789 = vmatpush1.xpose.msra.mxu0 %v1780
    %1790 = vmatprep.subr.mxu0 0.0
    %1791 = vmatpush1.xpose.msra.mxu0 %v1782
    %1792 = vmatprep.subr.mxu0 0.0
    %1793 = vmatpush1.xpose.msra.mxu0 0.0
    %1794 = vmatprep.subr.mxu0 0.0
    %1795 = vmatpush1.xpose.msra.mxu0 0.0
    %1796 = vmatprep.subr.mxu0 0.0
    %1797 = vmatpush1.xpose.msra.mxu0 0.0
    %1798 = vmatprep.subr.mxu0 0.0
    %1799 = vmatpush1.xpose.msra.mxu0 0.0
    %1800 = vmatprep.subr.mxu0 0.0
    %1801 = vmatpush1.xpose.msra.mxu0 0.0
    %1802 = vmatprep.subr.mxu0 0.0
    %1803 = vmatpush1.xpose.msra.mxu0 0.0
    %1804 = vmatprep.subr.mxu0 0.0
    %1805 = vmatpush1.xpose.msra.mxu0 0.0
    %1806 = vmatprep.subr.mxu0 0.0
    %1807 = vmatpush1.xpose.msra.mxu0 0.0
    %1808 = vmatprep.subr.mxu0 0.0
    %1809 = vmatpush1.xpose.msra.mxu0 0.0
    %1810 = vmatprep.subr.mxu0 0.0
    %1811 = vmatpush1.xpose.msra.mxu0 0.0
    %1812 = vmatprep.subr.mxu0 0.0
    %1813 = vmatpush1.xpose.msra.mxu0 0.0
    %1814 = vmatprep.subr.mxu0 0.0
    %1815 = vmatpush1.xpose.msra.mxu0 0.0
    %1816 = vmatprep.subr.mxu0 0.0
    %1817 = vmatpush1.xpose.msra.mxu0 0.0
    %1818 = vmatprep.subr.mxu0 0.0
    %1819 = vmatpush1.xpose.msra.mxu0 0.0
    %1820 = vmatprep.subr.mxu0 0.0
    %1821 = vmatpush1.xpose.msra.mxu0 0.0
    %1822 = vmatprep.subr.mxu0 0.0
    %1823 = vmatpush1.xpose.msra.mxu0 0.0
    %1824 = vmatprep.subr.mxu0 0.0
    %1825 = vmatpush1.xpose.msra.mxu0 0.0
    %1826 = vmatprep.subr.mxu0 0.0
    %1827 = vmatpush1.xpose.msra.mxu0 0.0
    %1828 = vmatprep.subr.mxu0 0.0
    %1829 = vmatpush1.xpose.msra.mxu0 0.0
    %1830 = vmatprep.subr.mxu0 0.0
    %1831 = vmatpush1.xpose.msra.mxu0 0.0
    %1832 = vmatprep.subr.mxu0 0.0
    %1833 = vmatpush1.xpose.msra.mxu0 0.0
    %1834 = vmatprep.subr.mxu0 0.0
    %1835 = vmatpush1.xpose.msra.mxu0 0.0
    %1836 = vmatprep.subr.mxu0 0.0
    %1837 = vmatpush1.xpose.msra.mxu0 0.0
    %1838 = vmatprep.subr.mxu0 0.0
    %1839 = vmatpush1.xpose.msra.mxu0 0.0
    %1840 = vmatprep.subr.mxu0 0.0
    %1841 = vmatpush1.xpose.msra.mxu0 0.0
    %1842 = vmatprep.subr.mxu0 0.0
    %1843 = vmatpush1.xpose.msra.mxu0 0.0
    %1844 = vmatprep.subr.mxu0 0.0
    %1845 = vmatpush1.xpose.msra.mxu0 0.0
    %1846 = vmatprep.subr.mxu0 0.0
    %1847 = vmatpush1.xpose.msra.mxu0 0.0
    %1848 = vmatprep.mubr.f32.mxu0 0.0
    %1849 = vmatmul.mubr.f32.gmra.mrb[0].mxu0 %v1774
    %v1850 = vpop.f32.mrb[0].mxu0
    %v1851 = vadd.f32 0.0, %v1850
    %v1852 = vpop.f32.mrb[0].mxu0
    %1853 = vdwg.mxu0
    %1854 = vrot.lane.b32.xlu0 %v479, 64
    %v1855 = vpop.permute.xlu0 %1854
    %1856 = vrot.lane.b32.xlu0 %v573, 64
    %v1857 = vpop.permute.xlu0 %1856
    %1858 = vrot.lane.b32.xlu0 %v579, 64
    %v1859 = vpop.permute.xlu0 %1858
    %1860 = vrot.lane.b32.xlu0 %v585, 64
    %v1861 = vpop.permute.xlu0 %1860
    %1862 = vrot.lane.b32.xlu0 %v591, 64
    %v1863 = vpop.permute.xlu0 %1862
    %v1864 = vsel %vm706, %v1855, 0
    %v1866 = vsel %vm706, %v1857, 0
    %v1868 = vsel %vm706, %v1859, 0
    %v1870 = vsel %vm706, %v1861, 0
    %v1872 = vsel %vm706, %v1863, 0
    %1874 = vmatprep.subr.mxu0 0.0
    %1875 = vmatpush1.xpose.msra.mxu0 %v1866
    %1876 = vmatprep.subr.mxu0 0.0
    %1877 = vmatpush1.xpose.msra.mxu0 %v1868
    %1878 = vmatprep.subr.mxu0 0.0
    %1879 = vmatpush1.xpose.msra.mxu0 %v1870
    %1880 = vmatprep.subr.mxu0 0.0
    %1881 = vmatpush1.xpose.msra.mxu0 %v1872
    %1882 = vmatprep.subr.mxu0 0.0
    %1883 = vmatpush1.xpose.msra.mxu0 0.0
    %1884 = vmatprep.subr.mxu0 0.0
    %1885 = vmatpush1.xpose.msra.mxu0 0.0
    %1886 = vmatprep.subr.mxu0 0.0
    %1887 = vmatpush1.xpose.msra.mxu0 0.0
    %1888 = vmatprep.subr.mxu0 0.0
    %1889 = vmatpush1.xpose.msra.mxu0 0.0
    %1890 = vmatprep.subr.mxu0 0.0
    %1891 = vmatpush1.xpose.msra.mxu0 0.0
    %1892 = vmatprep.subr.mxu0 0.0
    %1893 = vmatpush1.xpose.msra.mxu0 0.0
    %1894 = vmatprep.subr.mxu0 0.0
    %1895 = vmatpush1.xpose.msra.mxu0 0.0
    %1896 = vmatprep.subr.mxu0 0.0
    %1897 = vmatpush1.xpose.msra.mxu0 0.0
    %1898 = vmatprep.subr.mxu0 0.0
    %1899 = vmatpush1.xpose.msra.mxu0 0.0
    %1900 = vmatprep.subr.mxu0 0.0
    %1901 = vmatpush1.xpose.msra.mxu0 0.0
    %1902 = vmatprep.subr.mxu0 0.0
    %1903 = vmatpush1.xpose.msra.mxu0 0.0
    %1904 = vmatprep.subr.mxu0 0.0
    %1905 = vmatpush1.xpose.msra.mxu0 0.0
    %1906 = vmatprep.subr.mxu0 0.0
    %1907 = vmatpush1.xpose.msra.mxu0 0.0
    %1908 = vmatprep.subr.mxu0 0.0
    %1909 = vmatpush1.xpose.msra.mxu0 0.0
    %1910 = vmatprep.subr.mxu0 0.0
    %1911 = vmatpush1.xpose.msra.mxu0 0.0
    %1912 = vmatprep.subr.mxu0 0.0
    %1913 = vmatpush1.xpose.msra.mxu0 0.0
    %1914 = vmatprep.subr.mxu0 0.0
    %1915 = vmatpush1.xpose.msra.mxu0 0.0
    %1916 = vmatprep.subr.mxu0 0.0
    %1917 = vmatpush1.xpose.msra.mxu0 0.0
    %1918 = vmatprep.subr.mxu0 0.0
    %1919 = vmatpush1.xpose.msra.mxu0 0.0
    %1920 = vmatprep.subr.mxu0 0.0
    %1921 = vmatpush1.xpose.msra.mxu0 0.0
    %1922 = vmatprep.subr.mxu0 0.0
    %1923 = vmatpush1.xpose.msra.mxu0 0.0
    %1924 = vmatprep.subr.mxu0 0.0
    %1925 = vmatpush1.xpose.msra.mxu0 0.0
    %1926 = vmatprep.subr.mxu0 0.0
    %1927 = vmatpush1.xpose.msra.mxu0 0.0
    %1928 = vmatprep.subr.mxu0 0.0
    %1929 = vmatpush1.xpose.msra.mxu0 0.0
    %1930 = vmatprep.subr.mxu0 0.0
    %1931 = vmatpush1.xpose.msra.mxu0 0.0
    %1932 = vmatprep.subr.mxu0 0.0
    %1933 = vmatpush1.xpose.msra.mxu0 0.0
    %1934 = vmatprep.subr.mxu0 0.0
    %1935 = vmatpush1.xpose.msra.mxu0 0.0
    %1936 = vmatprep.subr.mxu0 0.0
    %1937 = vmatpush1.xpose.msra.mxu0 0.0
    %1938 = vmatprep.mubr.f32.mxu0 0.0
    %1939 = vmatmul.mubr.f32.gmra.mrb[0].mxu0 %v1864
    %v1940 = vpop.f32.mrb[0].mxu0
    %v1941 = vadd.f32 0.0, %v1940
    %v1942 = vpop.f32.mrb[0].mxu0
    %1943 = vdwg.mxu0
    %v1944 = vsel %vm877, %v1851, -inf
    %1945 = vmax.xlane.f32.xlu0 %v1944
    %v1946 = vpop.xlane.xlu0 %1945
    %v1947 = vsel %vm877, %v1941, -inf
    %1948 = vmax.xlane.f32.xlu0 %v1947
    %v1949 = vpop.xlane.xlu0 %1948
    %v1950 = vsub.f32 %v1851, %v1946
    %v1951 = vsub.f32 %v1941, %v1949
    %v1952 = vmul.f32 %v1950, 1.442695
    %v1953 = vpow.pop %v1952
    %v1954 = vmul.f32 %v1951, 1.442695
    %v1955 = vpow.pop %v1954
    %v1956 = vsel %vm877, %v1953, 0.0
    %1957 = vadd.xlane.f32.xlu0 %v1956
    %v1958 = vpop.xlane.xlu0 %1957
    %v1959 = vsel %vm877, %v1955, 0.0
    %1960 = vadd.xlane.f32.xlu0 %v1959
    %v1961 = vpop.xlane.xlu0 %1960
    %v1962 = vrcp.pop %v1958
    %v1963 = vmul.f32 %v1953, %v1962
    %v1964 = vrcp.pop %v1961
    %v1965 = vmul.f32 %v1955, %v1964
    %1970 = vrot.lane.b32.xlu0 %v662, 64
    %v1971 = vpop.permute.xlu0 %1970
    %1972 = vrot.lane.b32.xlu0 %v668, 64
    %v1973 = vpop.permute.xlu0 %1972
    %1974 = vrot.lane.b32.xlu0 %v674, 64
    %v1975 = vpop.permute.xlu0 %1974
    %1976 = vrot.lane.b32.xlu0 %v680, 64
    %v1977 = vpop.permute.xlu0 %1976
    %v1983 = vsel %vm877, %v1963, 0
    %1985 = vmatprep.subr.mxu0 0.0
    %1986 = vmatpush1.msra.mxu0 %v1971
    %1987 = vmatprep.subr.mxu0 0.0
    %1988 = vmatpush1.msra.mxu0 %v1973
    %1989 = vmatprep.subr.mxu0 0.0
    %1990 = vmatpush1.msra.mxu0 %v1975
    %1991 = vmatprep.subr.mxu0 0.0
    %1992 = vmatpush1.msra.mxu0 %v1977
    %1993 = vmatprep.subr.mxu0 0.0
    %1994 = vmatpush1.msra.mxu0 0.0
    %1995 = vmatprep.subr.mxu0 0.0
    %1996 = vmatpush1.msra.mxu0 0.0
    %1997 = vmatprep.subr.mxu0 0.0
    %1998 = vmatpush1.msra.mxu0 0.0
    %1999 = vmatprep.subr.mxu0 0.0
    %2000 = vmatpush1.msra.mxu0 0.0
    %2001 = vmatprep.subr.mxu0 0.0
    %2002 = vmatpush1.msra.mxu0 0.0
    %2003 = vmatprep.subr.mxu0 0.0
    %2004 = vmatpush1.msra.mxu0 0.0
    %2005 = vmatprep.subr.mxu0 0.0
    %2006 = vmatpush1.msra.mxu0 0.0
    %2007 = vmatprep.subr.mxu0 0.0
    %2008 = vmatpush1.msra.mxu0 0.0
    %2009 = vmatprep.subr.mxu0 0.0
    %2010 = vmatpush1.msra.mxu0 0.0
    %2011 = vmatprep.subr.mxu0 0.0
    %2012 = vmatpush1.msra.mxu0 0.0
    %2013 = vmatprep.subr.mxu0 0.0
    %2014 = vmatpush1.msra.mxu0 0.0
    %2015 = vmatprep.subr.mxu0 0.0
    %2016 = vmatpush1.msra.mxu0 0.0
    %2017 = vmatprep.subr.mxu0 0.0
    %2018 = vmatpush1.msra.mxu0 0.0
    %2019 = vmatprep.subr.mxu0 0.0
    %2020 = vmatpush1.msra.mxu0 0.0
    %2021 = vmatprep.subr.mxu0 0.0
    %2022 = vmatpush1.msra.mxu0 0.0
    %2023 = vmatprep.subr.mxu0 0.0
    %2024 = vmatpush1.msra.mxu0 0.0
    %2025 = vmatprep.subr.mxu0 0.0
    %2026 = vmatpush1.msra.mxu0 0.0
    %2027 = vmatprep.subr.mxu0 0.0
    %2028 = vmatpush1.msra.mxu0 0.0
    %2029 = vmatprep.subr.mxu0 0.0
    %2030 = vmatpush1.msra.mxu0 0.0
    %2031 = vmatprep.subr.mxu0 0.0
    %2032 = vmatpush1.msra.mxu0 0.0
    %2033 = vmatprep.subr.mxu0 0.0
    %2034 = vmatpush1.msra.mxu0 0.0
    %2035 = vmatprep.subr.mxu0 0.0
    %2036 = vmatpush1.msra.mxu0 0.0
    %2037 = vmatprep.subr.mxu0 0.0
    %2038 = vmatpush1.msra.mxu0 0.0
    %2039 = vmatprep.subr.mxu0 0.0
    %2040 = vmatpush1.msra.mxu0 0.0
    %2041 = vmatprep.subr.mxu0 0.0
    %2042 = vmatpush1.msra.mxu0 0.0
    %2043 = vmatprep.subr.mxu0 0.0
    %2044 = vmatpush1.msra.mxu0 0.0
    %2045 = vmatprep.subr.mxu0 0.0
    %2046 = vmatpush1.msra.mxu0 0.0
    %2047 = vmatprep.subr.mxu0 0.0
    %2048 = vmatpush1.msra.mxu0 0.0
    %2049 = vmatprep.mubr.f32.mxu0 0.0
    %2050 = vmatmul.mubr.f32.gmra.mrb[0].mxu0 %v1983
    %v2051 = vpop.f32.mrb[0].mxu0
    %v2052 = vadd.f32 0.0, %v2051
    %v2053 = vpop.f32.mrb[0].mxu0
    %2054 = vdwg.mxu0
    %2059 = vrot.lane.b32.xlu0 %v686, 64
    %v2060 = vpop.permute.xlu0 %2059
    %2061 = vrot.lane.b32.xlu0 %v692, 64
    %v2062 = vpop.permute.xlu0 %2061
    %2063 = vrot.lane.b32.xlu0 %v698, 64
    %v2064 = vpop.permute.xlu0 %2063
    %2065 = vrot.lane.b32.xlu0 %v704, 64
    %v2066 = vpop.permute.xlu0 %2065
    %v2072 = vsel %vm877, %v1965, 0
    %2074 = vmatprep.subr.mxu0 0.0
    %2075 = vmatpush1.msra.mxu0 %v2060
    %2076 = vmatprep.subr.mxu0 0.0
    %2077 = vmatpush1.msra.mxu0 %v2062
    %2078 = vmatprep.subr.mxu0 0.0
    %2079 = vmatpush1.msra.mxu0 %v2064
    %2080 = vmatprep.subr.mxu0 0.0
    %2081 = vmatpush1.msra.mxu0 %v2066
    %2082 = vmatprep.subr.mxu0 0.0
    %2083 = vmatpush1.msra.mxu0 0.0
    %2084 = vmatprep.subr.mxu0 0.0
    %2085 = vmatpush1.msra.mxu0 0.0
    %2086 = vmatprep.subr.mxu0 0.0
    %2087 = vmatpush1.msra.mxu0 0.0
    %2088 = vmatprep.subr.mxu0 0.0
    %2089 = vmatpush1.msra.mxu0 0.0
    %2090 = vmatprep.subr.mxu0 0.0
    %2091 = vmatpush1.msra.mxu0 0.0
    %2092 = vmatprep.subr.mxu0 0.0
    %2093 = vmatpush1.msra.mxu0 0.0
    %2094 = vmatprep.subr.mxu0 0.0
    %2095 = vmatpush1.msra.mxu0 0.0
    %2096 = vmatprep.subr.mxu0 0.0
    %2097 = vmatpush1.msra.mxu0 0.0
    %2098 = vmatprep.subr.mxu0 0.0
    %2099 = vmatpush1.msra.mxu0 0.0
    %2100 = vmatprep.subr.mxu0 0.0
    %2101 = vmatpush1.msra.mxu0 0.0
    %2102 = vmatprep.subr.mxu0 0.0
    %2103 = vmatpush1.msra.mxu0 0.0
    %2104 = vmatprep.subr.mxu0 0.0
    %2105 = vmatpush1.msra.mxu0 0.0
    %2106 = vmatprep.subr.mxu0 0.0
    %2107 = vmatpush1.msra.mxu0 0.0
    %2108 = vmatprep.subr.mxu0 0.0
    %2109 = vmatpush1.msra.mxu0 0.0
    %2110 = vmatprep.subr.mxu0 0.0
    %2111 = vmatpush1.msra.mxu0 0.0
    %2112 = vmatprep.subr.mxu0 0.0
    %2113 = vmatpush1.msra.mxu0 0.0
    %2114 = vmatprep.subr.mxu0 0.0
    %2115 = vmatpush1.msra.mxu0 0.0
    %2116 = vmatprep.subr.mxu0 0.0
    %2117 = vmatpush1.msra.mxu0 0.0
    %2118 = vmatprep.subr.mxu0 0.0
    %2119 = vmatpush1.msra.mxu0 0.0
    %2120 = vmatprep.subr.mxu0 0.0
    %2121 = vmatpush1.msra.mxu0 0.0
    %2122 = vmatprep.subr.mxu0 0.0
    %2123 = vmatpush1.msra.mxu0 0.0
    %2124 = vmatprep.subr.mxu0 0.0
    %2125 = vmatpush1.msra.mxu0 0.0
    %2126 = vmatprep.subr.mxu0 0.0
    %2127 = vmatpush1.msra.mxu0 0.0
    %2128 = vmatprep.subr.mxu0 0.0
    %2129 = vmatpush1.msra.mxu0 0.0
    %2130 = vmatprep.subr.mxu0 0.0
    %2131 = vmatpush1.msra.mxu0 0.0
    %2132 = vmatprep.subr.mxu0 0.0
    %2133 = vmatpush1.msra.mxu0 0.0
    %2134 = vmatprep.subr.mxu0 0.0
    %2135 = vmatpush1.msra.mxu0 0.0
    %2136 = vmatprep.subr.mxu0 0.0
    %2137 = vmatpush1.msra.mxu0 0.0
    %2138 = vmatprep.mubr.f32.mxu0 0.0
    %2139 = vmatmul.mubr.f32.gmra.mrb[0].mxu0 %v2072
    %v2140 = vpop.f32.mrb[0].mxu0
    %v2141 = vadd.f32 0.0, %v2140
    %v2142 = vpop.f32.mrb[0].mxu0
    %2143 = vdwg.mxu0
    %2146 = vrot.lane.b32.xlu0 %v1334, 64
    %v2147 = vpop.permute.xlu0 %2146
    %2148 = vrot.lane.b32.xlu0 %v1423, 64
    %v2149 = vpop.permute.xlu0 %2148
    %2154 = vrot.lane.b32.xlu0 %v2052, 64
    %v2155 = vpop.permute.xlu0 %2154
    %2156 = vrot.lane.b32.xlu0 %v2141, 64
    %v2157 = vpop.permute.xlu0 %2156
    %v2160 = vsel %vm706, %v970, %v2147
    %v2161 = vsel %vm706, %v1043, %v2149
    %v2162 = vsel %vm706, %v1688, %v2155
    %v2163 = vsel %vm706, %v1761, %v2157
    %v2164 = vld [vmem:[#allocation2] sm:$0xff]
    %v2165 = vld [vmem:[#allocation2 + $0x8] sm:$0xff]
    %v2166 = vld [vmem:[#allocation2 + $0x10] sm:$0xff]
    %v2167 = vld [vmem:[#allocation2 + $0x18] sm:$0xff]
    %2168 = vmatprep.subr.mxu0 %v336
    %2169 = vmatpush1.msra.mxu0 %v335
    %2170 = vmatprep.subr.mxu0 %v338
    %2171 = vmatpush1.msra.mxu0 %v337
    %2172 = vmatprep.subr.mxu0 %v340
    %2173 = vmatpush1.msra.mxu0 %v339
    %2174 = vmatprep.subr.mxu0 %v342
    %2175 = vmatpush1.msra.mxu0 %v341
    %2176 = vmatprep.subr.mxu0 %v344
    %2177 = vmatpush1.msra.mxu0 %v343
    %2178 = vmatprep.subr.mxu0 %v346
    %2179 = vmatpush1.msra.mxu0 %v345
    %2180 = vmatprep.subr.mxu0 %v348
    %2181 = vmatpush1.msra.mxu0 %v347
    %2182 = vmatprep.subr.mxu0 %v350
    %2183 = vmatpush1.msra.mxu0 %v349
    %2184 = vmatprep.subr.mxu0 %v352
    %2185 = vmatpush1.msra.mxu0 %v351
    %2186 = vmatprep.subr.mxu0 %v354
    %2187 = vmatpush1.msra.mxu0 %v353
    %2188 = vmatprep.subr.mxu0 %v356
    %2189 = vmatpush1.msra.mxu0 %v355
    %2190 = vmatprep.subr.mxu0 %v358
    %2191 = vmatpush1.msra.mxu0 %v357
    %2192 = vmatprep.subr.mxu0 %v360
    %2193 = vmatpush1.msra.mxu0 %v359
    %2194 = vmatprep.subr.mxu0 %v362
    %2195 = vmatpush1.msra.mxu0 %v361
    %2196 = vmatprep.subr.mxu0 %v364
    %2197 = vmatpush1.msra.mxu0 %v363
    %2198 = vmatprep.subr.mxu0 %v366
    %2199 = vmatpush1.msra.mxu0 %v365
    %2200 = vmatprep.subr.mxu0 %v368
    %2201 = vmatpush1.msra.mxu0 %v367
    %2202 = vmatprep.subr.mxu0 %v370
    %2203 = vmatpush1.msra.mxu0 %v369
    %2204 = vmatprep.subr.mxu0 %v372
    %2205 = vmatpush1.msra.mxu0 %v371
    %2206 = vmatprep.subr.mxu0 %v374
    %2207 = vmatpush1.msra.mxu0 %v373
    %2208 = vmatprep.subr.mxu0 %v376
    %2209 = vmatpush1.msra.mxu0 %v375
    %2210 = vmatprep.subr.mxu0 %v378
    %2211 = vmatpush1.msra.mxu0 %v377
    %2212 = vmatprep.subr.mxu0 %v380
    %2213 = vmatpush1.msra.mxu0 %v379
    %2214 = vmatprep.subr.mxu0 %v382
    %2215 = vmatpush1.msra.mxu0 %v381
    %2216 = vmatprep.subr.mxu0 %v384
    %2217 = vmatpush1.msra.mxu0 %v383
    %2218 = vmatprep.subr.mxu0 %v386
    %2219 = vmatpush1.msra.mxu0 %v385
    %2220 = vmatprep.subr.mxu0 %v388
    %2221 = vmatpush1.msra.mxu0 %v387
    %2222 = vmatprep.subr.mxu0 %v390
    %2223 = vmatpush1.msra.mxu0 %v389
    %2224 = vmatprep.subr.mxu0 %v392
    %2225 = vmatpush1.msra.mxu0 %v391
    %2226 = vmatprep.subr.mxu0 %v394
    %2227 = vmatpush1.msra.mxu0 %v393
    %2228 = vmatprep.subr.mxu0 %v396
    %2229 = vmatpush1.msra.mxu0 %v395
    %2230 = vmatprep.subr.mxu0 %v398
    %2231 = vmatpush1.msra.mxu0 %v397
    %2232 = vmatprep.mubr.f32.mxu0 %v2162
    %2233 = vmatmul.mubr.f32.gmra.mrb[0].mxu0 %v2160
    %v2234 = vpop.f32.mrb[0].mxu0
    %v2235 = vadd.f32 0.0, %v2234
    %v2236 = vpop.f32.mrb[0].mxu0
    %v2237 = vadd.f32 0.0, %v2236
    %2238 = vmatprep.mubr.f32.mxu0 %v2163
    %2239 = vmatmul.mubr.f32.gmra.mrb[0].mxu0 %v2161
    %v2240 = vpop.f32.mrb[0].mxu0
    %v2241 = vadd.f32 0.0, %v2240
    %v2242 = vpop.f32.mrb[0].mxu0
    %v2243 = vadd.f32 0.0, %v2242
    %2244 = vdwg.mxu0
    %v2245 = vadd.f32 %v2164, %v2235
    %v2246 = vadd.f32 %v2165, %v2237
    %v2247 = vadd.f32 %v2166, %v2241
    %v2248 = vadd.f32 %v2167, %v2243
    %2249 = vst [vmem:[#allocation2] sm:$0xff] %v2245
    %2250 = vst [vmem:[#allocation2 + $0x8] sm:$0xff] %v2246
    %2251 = vst [vmem:[#allocation2 + $0x10] sm:$0xff] %v2247
    %2252 = vst [vmem:[#allocation2 + $0x18] sm:$0xff] %v2248
    // Predicated region
    $region54: #{tpu_custom_call.1} parent=1 // pred_check
      %p2253 = pneg %p106
    $region55: #{tpu_custom_call.1} parent=1 // pred_check_branch
      %2255 = sbr.rel (%p2253) target = $region57
    $region56: #{tpu_custom_call.1} parent=1 // pred_region
      %v2256 = vld [vmem:[#allocation2] sm:$0xff]
      %v2257 = vld [vmem:[#allocation2 + $0x8] sm:$0xff]
      %v2258 = vld [vmem:[#allocation2 + $0x10] sm:$0xff]
      %v2259 = vld [vmem:[#allocation2 + $0x18] sm:$0xff]
      %2260 = vst [vmem:[#allocation14] sm:$0xff] %v2256
      %2261 = vst [vmem:[#allocation14 + $0x8] sm:$0xff] %v2257
      %2262 = vst [vmem:[#allocation14 + $0x10] sm:$0xff] %v2258
      %2263 = vst [vmem:[#allocation14 + $0x18] sm:$0xff] %v2259
    $region57: #{tpu_custom_call.1} parent=1 // pred_fallthru
      _
    // Predicated region
    $region58: #{tpu_custom_call.1} parent=1 // pred_check
      _
    $region59: #{tpu_custom_call.1} parent=1 // pred_check_branch
      %2265 = sbr.rel (0) target = $region61
    $region60: #{tpu_custom_call.1} parent=1 // pred_region
      %s2267 = ssub.s32 512, 512
      %2268 = vsyncadd [#allocation5], %s2267
      %s2269 = sshll.u32 [#allocation14], 4
      %s2270 = int_to_ptr.vmem [resolvable:$true] %s2269
      %2275 = dma.vmem_to_hbm [thread:$0]  %s2270, 512, %s6, [#allocation5], 256, 256, 16
    $region61: #{tpu_custom_call.1} parent=1 // pred_fallthru
      _
    // Predicated region
    $region62: #{tpu_custom_call.1} parent=1 // pred_check
      _
    $region63: #{tpu_custom_call.1} parent=1 // pred_check_branch
      %2277 = sbr.rel (0) target = $region65
    $region64: #{tpu_custom_call.1} parent=1 // pred_region
      %2278 = dma.done [#allocation5], 512
    $region65: #{tpu_custom_call.1} parent=1 // pred_fallthru
      _
    %2279 = vsyncpa [#allocation4], 1
    %2280 = vsyncpa [#allocation7], 1
    %2281 = vsyncpa [#allocation10], 1
    %2282 = vsyncpa [#allocation13], 1
    %2283 = vsyncpa [#allocation5], 1

</llo_original>
